<compile_context>
chip_gen: v7x
topology: tpu7x:2x2x1
jax: 0.10.0
libtpu: 0.0.40
codegen_flags: <defaults>
</compile_context>

<pallas_src>
import functools

import jax
import jax.numpy as jnp
from jax import lax
from jax.experimental import pallas as pl
from jax.experimental.pallas import tpu as pltpu

HP = 128        # per-gate lane width padded to one full 128-lane vreg
OP = 128        # class dim padded for a lane-dense output store
_NEG = -1e30    # f32 bias for padded classes (exp underflows to exactly 0)


def _wiki_lstm_kernel(ids_ref, emb_ref, w_ih_ref, w_hh_ref, b_ref,
                      w_out_ref, b_out_ref, scores_ref, xg_ref, lstm_ref):
    """Whole forward pass (gather + LSTM recurrence + classifier head) in VMEM.

    ids_ref    : (S, 1)     int32  clamped token ids
    emb_ref    : (VP, E)    bf16   embedding table, rows padded to VP
    w_ih_ref   : (E, 4*HP)  bf16   input->gates weights (gate order i,f,g,o; padded cols)
    w_hh_ref   : (H, 4*HP)  bf16   hidden->gates weights, live rows only (K = H)
    b_ref      : (1, 4*HP)  f32    b_ih + b_hh (zero-padded per gate)
    w_out_ref  : (HP, OP)   bf16   hidden2class weights (zero-padded rows/cols)
    b_out_ref  : (1, OP)    f32    hidden2class bias (padded classes = -1e30)
    scores_ref : (S, OP)    f32    output: log_softmax over padded class axis
    xg_ref     : (S, 4*HP)  f32    scratch: precomputed input-gate contributions
    lstm_ref   : (S, HP)    f32    scratch: per-timestep LSTM hidden outputs
    """
    S = scores_ref.shape[0]
    hp = lstm_ref.shape[1]          # 128: padded per-gate / hidden width
    h_live = w_hh_ref.shape[0]      # 32: live hidden width (K of recurrent matmul)
    vp = emb_ref.shape[0]           # padded vocab

    # ---- fused embedding gather as one one-hot MXU matmul (no serial loads,
    #      inherently safe for out-of-range ids: they select no row) ----
    ids = ids_ref[...]                                            # (S, 1) int32
    iota = lax.broadcasted_iota(jnp.int32, (S, vp), 1)
    onehot = (iota == ids).astype(jnp.bfloat16)                   # (S, VP)
    embeds = jnp.dot(onehot, emb_ref[...],
                     preferred_element_type=jnp.float32)          # (S, E) exact bf16 rows

    # ---- batched x_t @ W_ih + (b_ih + b_hh) for all timesteps (one MXU op) ----
    xg_ref[...] = jnp.dot(embeds.astype(jnp.bfloat16), w_ih_ref[...],
                          preferred_element_type=jnp.float32) + b_ref[...]

    # ---- LSTM recurrence, fully unrolled (S is static) ----
    h0 = jnp.zeros((1, hp), jnp.float32)
    c0 = jnp.zeros((1, hp), jnp.float32)

    def step(t, carry):
        h, c = carry
        # Only the live hidden lanes feed the MXU: loop-invariant weight push
        # per step is (32, 512) bf16, single pass, f32 accumulation.
        gates = xg_ref[pl.ds(t, 1), :] + jnp.dot(
            h[:, :h_live].astype(jnp.bfloat16), w_hh_ref[...],
            preferred_element_type=jnp.float32)                   # (1, 4*HP) f32
        # Each gate slice is exactly one full 128-lane vreg (no lane shuffles).
        i_g = jax.nn.sigmoid(gates[:, 0 * hp:1 * hp])
        f_g = jax.nn.sigmoid(gates[:, 1 * hp:2 * hp])
        g_g = jnp.tanh(gates[:, 2 * hp:3 * hp])
        o_g = jax.nn.sigmoid(gates[:, 3 * hp:4 * hp])
        # Padded lanes: gates==0 -> g==0 -> c,h padded lanes stay exactly 0.
        c_new = f_g * c + i_g * g_g
        h_new = o_g * jnp.tanh(c_new)
        lstm_ref[pl.ds(t, 1), :] = h_new
        return (h_new, c_new)

    lax.fori_loop(0, S, step, (h0, c0), unroll=True)
    # TODO(synk): on v7x, explicit MXU driving (matmul_push_rhs pinning of W_hh
    # + MRB accumulation of xg_t) could further shorten the serial chain; kept
    # on jnp.dot for lowering robustness.

    # ---- hidden2class + stable log_softmax (f32 head; padded classes at -1e30) ----
    logits = jnp.dot(lstm_ref[...].astype(jnp.bfloat16), w_out_ref[...],
                     preferred_element_type=jnp.float32) + b_out_ref[...]
    m = jnp.max(logits, axis=-1, keepdims=True)
    z = logits - m
    scores_ref[...] = z - jnp.log(jnp.sum(jnp.exp(z), axis=-1, keepdims=True))


def prepare_params(params):
    """One-time layout prep (padding / transposes / bf16 casts), hoisted out of
    the per-call forward path per the perf review."""
    emb = params["embedding"].astype(jnp.float32)
    V, E = emb.shape
    H = params["w_hh"].shape[1]
    O = params["w_out"].shape[0]
    VP = ((V + 127) // 128) * 128

    def pad_gate_cols(w):                       # (in, 4H) -> (in, 4*HP), per-gate zero pad
        w4 = w.reshape(w.shape[0], 4, H)
        return jnp.pad(w4, ((0, 0), (0, 0), (0, HP - H))).reshape(w.shape[0], 4 * HP)

    emb_p = jnp.pad(emb, ((0, VP - V), (0, 0))).astype(jnp.bfloat16)               # (VP, E)
    w_ih_p = pad_gate_cols(params["w_ih"].T.astype(jnp.float32)).astype(jnp.bfloat16)   # (E, 4*HP)
    w_hh_p = pad_gate_cols(params["w_hh"].T.astype(jnp.float32)).astype(jnp.bfloat16)   # (H, 4*HP)
    b = (params["b_ih"] + params["b_hh"]).astype(jnp.float32)
    b_p = jnp.pad(b.reshape(4, H), ((0, 0), (0, HP - H))).reshape(1, 4 * HP)       # (1, 4*HP) f32
    w_out_p = jnp.pad(params["w_out"].T.astype(jnp.float32),
                      ((0, HP - H), (0, OP - O))).astype(jnp.bfloat16)             # (HP, OP)
    b_out_p = jnp.full((1, OP), _NEG, jnp.float32).at[0, :O].set(
        params["b_out"].astype(jnp.float32))                                       # (1, OP) f32
    return {"emb": emb_p, "w_ih": w_ih_p, "w_hh": w_hh_p, "b": b_p,
            "w_out": w_out_p, "b_out": b_out_p}


@functools.partial(jax.jit, static_argnames=("num_classes",))
def wiki_classifier_forward(sentence, prep, *, num_classes):
    """sentence: (S,) int token ids -> (S, num_classes) f32 log-probs."""
    VP, E = prep["emb"].shape
    H = prep["w_hh"].shape[0]
    S = sentence.shape[0]
    # Clamp ids defensively (one-hot gather is OOB-safe anyway).
    ids = jnp.clip(sentence.astype(jnp.int32), 0, VP - 1).reshape(S, 1)

    scores_p = pl.pallas_call(
        _wiki_lstm_kernel,
        out_shape=jax.ShapeDtypeStruct((S, OP), jnp.float32),
        grid_spec=pltpu.PrefetchScalarGridSpec(
            num_scalar_prefetch=0,
            grid=(1,),
            in_specs=[
                pl.BlockSpec((S, 1), lambda i: (0, 0)),            # token ids
                pl.BlockSpec((VP, E), lambda i: (0, 0)),           # embedding table (bf16)
                pl.BlockSpec((E, 4 * HP), lambda i: (0, 0)),       # W_ih (bf16, padded)
                pl.BlockSpec((H, 4 * HP), lambda i: (0, 0)),       # W_hh (bf16, live rows)
                pl.BlockSpec((1, 4 * HP), lambda i: (0, 0)),       # bias (f32)
                pl.BlockSpec((HP, OP), lambda i: (0, 0)),          # W_out (bf16, padded)
                pl.BlockSpec((1, OP), lambda i: (0, 0)),           # b_out (f32, padded)
            ],
            out_specs=pl.BlockSpec((S, OP), lambda i: (0, 0)),
            scratch_shapes=[
                pltpu.VMEM((S, 4 * HP), jnp.float32),   # xg precompute
                pltpu.VMEM((S, HP), jnp.float32),       # lstm outputs
            ],
        ),
        compiler_params=pltpu.CompilerParams(
            dimension_semantics=("arbitrary",)),
        # VMEM footprint is well under 1 MB -> no vmem_limit_bytes needed.
    )(ids, prep["emb"], prep["w_ih"], prep["w_hh"], prep["b"],
      prep["w_out"], prep["b_out"])
    # TODO(synk): for realistic vocab sizes, replace the whole-table VMEM
    # residency with an S-row DMA gather (memory_space=pl.ANY + make_async_copy
    # driven by prefetched ids) so table traffic is S*E instead of V*E.

    return scores_p[:, :num_classes]


def init_params(key, vocab_size, embedding_dim, hidden_dim, output_dim):
    """Deterministic synthetic init mirroring the PyTorch module's shapes."""
    ks = jax.random.split(key, 7)
    s = 1.0 / jnp.sqrt(jnp.float32(hidden_dim))
    return {
        "embedding": jax.random.normal(ks[0], (vocab_size, embedding_dim), jnp.float32),
        "w_ih": jax.random.uniform(ks[1], (4 * hidden_dim, embedding_dim), jnp.float32, -s, s),
        "w_hh": jax.random.uniform(ks[2], (4 * hidden_dim, hidden_dim), jnp.float32, -s, s),
        "b_ih": jax.random.uniform(ks[3], (4 * hidden_dim,), jnp.float32, -s, s),
        "b_hh": jax.random.uniform(ks[4], (4 * hidden_dim,), jnp.float32, -s, s),
        "w_out": jax.random.uniform(ks[5], (output_dim, hidden_dim), jnp.float32, -s, s),
        "b_out": jax.random.uniform(ks[6], (output_dim,), jnp.float32, -s, s),
    }


def _reference_forward(sentence, params):
    """Pure-JAX f32 reference replicating the PyTorch forward semantics."""
    embeds = params["embedding"][sentence]            # (S, E)
    H = params["w_hh"].shape[1]
    b = params["b_ih"] + params["b_hh"]

    def step(carry, x_t):
        h, c = carry
        gates = x_t @ params["w_ih"].T + h @ params["w_hh"].T + b
        i_g = jax.nn.sigmoid(gates[0 * H:1 * H])
        f_g = jax.nn.sigmoid(gates[1 * H:2 * H])
        g_g = jnp.tanh(gates[2 * H:3 * H])
        o_g = jax.nn.sigmoid(gates[3 * H:4 * H])
        c_new = f_g * c + i_g * g_g
        h_new = o_g * jnp.tanh(c_new)
        return (h_new, c_new), h_new

    h0 = jnp.zeros((H,), jnp.float32)
    c0 = jnp.zeros((H,), jnp.float32)
    _, lstm_out = lax.scan(step, (h0, c0), embeds)
    class_space = lstm_out @ params["w_out"].T + params["b_out"]
    return jax.nn.log_softmax(class_space, axis=1)


if __name__ == "__main__":
    VOCAB_SIZE = 50
    EMBEDDING_DIM = 32
    HIDDEN_DIM = 32
    OUTPUT_DIM = 8
    SEQ_LEN = 8

    key = jax.random.PRNGKey(0)
    k_params, k_sent = jax.random.split(key)
    params = init_params(k_params, VOCAB_SIZE, EMBEDDING_DIM, HIDDEN_DIM, OUTPUT_DIM)
    sentence = jax.random.randint(k_sent, (SEQ_LEN,), 0, VOCAB_SIZE, dtype=jnp.int32)

    # One-time layout prep (hoisted out of the per-call path per the review).
    prep = jax.block_until_ready(prepare_params(params))

    scores = jax.block_until_ready(
        wiki_classifier_forward(sentence, prep, num_classes=OUTPUT_DIM))
    ref = jax.block_until_ready(_reference_forward(sentence, params))

    assert scores.shape == (SEQ_LEN, OUTPUT_DIM)
    # bf16 MXU operands (f32 accumulation) per the perf review -> tolerance is
    # loosened vs. the pure-f32 reference (precision/perf tradeoff, not a bug).
    assert jnp.allclose(scores, ref, atol=1e-1, rtol=2e-2)
    print("KERNEL_OK")
</pallas_src>

<mosaic_0001>
module attributes {stable_mosaic.version = 11 : i64} {
  func.func @_wiki_lstm_kernel(%arg0: i32, %arg1: memref<8x1xi32, #tpu.memory_space<vmem>>, %arg2: memref<128x32xbf16, #tpu.memory_space<vmem>>, %arg3: memref<32x512xbf16, #tpu.memory_space<vmem>>, %arg4: memref<32x512xbf16, #tpu.memory_space<vmem>>, %arg5: memref<1x512xf32, #tpu.memory_space<vmem>>, %arg6: memref<128x128xbf16, #tpu.memory_space<vmem>>, %arg7: memref<1x128xf32, #tpu.memory_space<vmem>>, %arg8: memref<8x128xf32, #tpu.memory_space<vmem>>, %arg9: memref<8x512xf32, #tpu.memory_space<vmem>>, %arg10: memref<8x128xf32, #tpu.memory_space<vmem>>) attributes {dimension_semantics = [#tpu.dimension_semantics<arbitrary>], iteration_bounds = array<i64: 1>, scalar_prefetch = 0 : i64, scratch_operands = 2 : i64, tpu.core_type = #tpu.core_type<tc>, window_params = [{pipeline_mode = #tpu.pipeline_mode<synchronous>, transform_indices = @transform_0, window_bounds = array<i64: 8, 1>}, {pipeline_mode = #tpu.pipeline_mode<synchronous>, transform_indices = @transform_1, window_bounds = array<i64: 128, 32>}, {pipeline_mode = #tpu.pipeline_mode<synchronous>, transform_indices = @transform_2, window_bounds = array<i64: 32, 512>}, {pipeline_mode = #tpu.pipeline_mode<synchronous>, transform_indices = @transform_3, window_bounds = array<i64: 32, 512>}, {pipeline_mode = #tpu.pipeline_mode<synchronous>, transform_indices = @transform_4, window_bounds = array<i64: 1, 512>}, {pipeline_mode = #tpu.pipeline_mode<synchronous>, transform_indices = @transform_5, window_bounds = array<i64: 128, 128>}, {pipeline_mode = #tpu.pipeline_mode<synchronous>, transform_indices = @transform_6, window_bounds = array<i64: 1, 128>}, {pipeline_mode = #tpu.pipeline_mode<synchronous>, transform_indices = @transform_7, window_bounds = array<i64: 8, 128>}]} {
    %c0 = arith.constant 0 : index
    %c0_0 = arith.constant 0 : index
    %0 = vector.load %arg1[%c0, %c0_0] : memref<8x1xi32, #tpu.memory_space<vmem>>, vector<8x1xi32>
    %1 = tpu.iota {dimensions = array<i32: 1>} : vector<8x128xi32>
    %2 = vector.broadcast %0 : vector<8x1xi32> to vector<8x128xi32>
    %3 = arith.cmpi eq, %1, %2 : vector<8x128xi32>
    %4 = arith.extui %3 : vector<8x128xi1> to vector<8x128xi32>
    %5 = arith.sitofp %4 : vector<8x128xi32> to vector<8x128xf32>
    %6 = arith.truncf %5 : vector<8x128xf32> to vector<8x128xbf16>
    %c0_1 = arith.constant 0 : index
    %c0_2 = arith.constant 0 : index
    %7 = vector.load %arg2[%c0_1, %c0_2] : memref<128x32xbf16, #tpu.memory_space<vmem>>, vector<128x32xbf16>
    %cst = arith.constant dense<0.000000e+00> : vector<8x32xf32>
    %8 = tpu.matmul %6, %7, %cst {dimension_numbers = #tpu.dot_dimension_numbers<[1], [0], [0], [1], [0, 0, 1, 1], [], []>} : vector<8x128xbf16>, vector<128x32xbf16>, vector<8x32xf32> -> vector<8x32xf32>
    %9 = arith.truncf %8 : vector<8x32xf32> to vector<8x32xbf16>
    %c0_3 = arith.constant 0 : index
    %c0_4 = arith.constant 0 : index
    %10 = vector.load %arg3[%c0_3, %c0_4] : memref<32x512xbf16, #tpu.memory_space<vmem>>, vector<32x512xbf16>
    %cst_5 = arith.constant dense<0.000000e+00> : vector<8x512xf32>
    %11 = tpu.matmul %9, %10, %cst_5 {dimension_numbers = #tpu.dot_dimension_numbers<[1], [0], [0], [1], [0, 0, 1, 1], [], []>} : vector<8x32xbf16>, vector<32x512xbf16>, vector<8x512xf32> -> vector<8x512xf32>
    %c0_6 = arith.constant 0 : index
    %c0_7 = arith.constant 0 : index
    %12 = vector.load %arg5[%c0_6, %c0_7] : memref<1x512xf32, #tpu.memory_space<vmem>>, vector<1x512xf32>
    %13 = vector.broadcast %12 : vector<1x512xf32> to vector<8x512xf32>
    %14 = arith.addf %11, %13 : vector<8x512xf32>
    %c0_8 = arith.constant 0 : index
    %c0_9 = arith.constant 0 : index
    %15 = vector.load %arg9[%c0_8, %c0_9] : memref<8x512xf32, #tpu.memory_space<vmem>>, vector<8x512xf32>
    tpu.vector_store %arg9[%c0_8, %c0_9], %14 {strides = array<i32>} : memref<8x512xf32, #tpu.memory_space<vmem>>, vector<8x512xf32>,
    %cst_10 = arith.constant 0.000000e+00 : f32
    %16 = vector.broadcast %cst_10 : f32 to vector<1x128xf32>
    %cst_11 = arith.constant 0.000000e+00 : f32
    %17 = vector.broadcast %cst_11 : f32 to vector<1x128xf32>
    %c0_i32 = arith.constant 0 : i32
    %18 = arith.index_cast %c0_i32 : i32 to index
    %c0_12 = arith.constant 0 : index
    %19 = vector.load %arg9[%18, %c0_12] : memref<8x512xf32, #tpu.memory_space<vmem>>, vector<1x512xf32>
    %20 = vector.extract_strided_slice %16 {offsets = [0, 0], sizes = [1, 32], strides = [1, 1]} : vector<1x128xf32> to vector<1x32xf32>
    %21 = arith.truncf %20 : vector<1x32xf32> to vector<1x32xbf16>
    %c0_13 = arith.constant 0 : index
    %c0_14 = arith.constant 0 : index
    %22 = vector.load %arg4[%c0_13, %c0_14] : memref<32x512xbf16, #tpu.memory_space<vmem>>, vector<32x512xbf16>
    %cst_15 = arith.constant dense<0.000000e+00> : vector<1x512xf32>
    %23 = tpu.matmul %21, %22, %cst_15 {dimension_numbers = #tpu.dot_dimension_numbers<[1], [0], [0], [1], [0, 0, 1, 1], [], []>} : vector<1x32xbf16>, vector<32x512xbf16>, vector<1x512xf32> -> vector<1x512xf32>
    %24 = arith.addf %19, %23 : vector<1x512xf32>
    %25 = vector.extract_strided_slice %24 {offsets = [0, 0], sizes = [1, 128], strides = [1, 1]} : vector<1x512xf32> to vector<1x128xf32>
    %26 = arith.negf %25 : vector<1x128xf32>
    %27 = math.exp %26 : vector<1x128xf32>
    %cst_16 = arith.constant 1.000000e+00 : f32
    %28 = vector.broadcast %cst_16 : f32 to vector<1x128xf32>
    %29 = arith.addf %28, %27 : vector<1x128xf32>
    %30 = arith.divf %28, %29 : vector<1x128xf32>
    %31 = vector.extract_strided_slice %24 {offsets = [0, 128], sizes = [1, 128], strides = [1, 1]} : vector<1x512xf32> to vector<1x128xf32>
    %32 = arith.negf %31 : vector<1x128xf32>
    %33 = math.exp %32 : vector<1x128xf32>
    %cst_17 = arith.constant 1.000000e+00 : f32
    %34 = vector.broadcast %cst_17 : f32 to vector<1x128xf32>
    %35 = arith.addf %34, %33 : vector<1x128xf32>
    %36 = arith.divf %34, %35 : vector<1x128xf32>
    %37 = vector.extract_strided_slice %24 {offsets = [0, 256], sizes = [1, 128], strides = [1, 1]} : vector<1x512xf32> to vector<1x128xf32>
    %38 = math.tanh %37 : vector<1x128xf32>
    %39 = vector.extract_strided_slice %24 {offsets = [0, 384], sizes = [1, 128], strides = [1, 1]} : vector<1x512xf32> to vector<1x128xf32>
    %40 = arith.negf %39 : vector<1x128xf32>
    %41 = math.exp %40 : vector<1x128xf32>
    %cst_18 = arith.constant 1.000000e+00 : f32
    %42 = vector.broadcast %cst_18 : f32 to vector<1x128xf32>
    %43 = arith.addf %42, %41 : vector<1x128xf32>
    %44 = arith.divf %42, %43 : vector<1x128xf32>
    %45 = arith.mulf %36, %17 : vector<1x128xf32>
    %46 = arith.mulf %30, %38 : vector<1x128xf32>
    %47 = arith.addf %45, %46 : vector<1x128xf32>
    %48 = math.tanh %47 : vector<1x128xf32>
    %49 = arith.mulf %44, %48 : vector<1x128xf32>
    %50 = arith.index_cast %c0_i32 : i32 to index
    %c0_19 = arith.constant 0 : index
    %51 = vector.load %arg10[%50, %c0_19] : memref<8x128xf32, #tpu.memory_space<vmem>>, vector<1x128xf32>
    tpu.vector_store %arg10[%50, %c0_19], %49 {strides = array<i32>} : memref<8x128xf32, #tpu.memory_space<vmem>>, vector<1x128xf32>,
    %c1_i32 = arith.constant 1 : i32
    %52 = arith.index_cast %c1_i32 : i32 to index
    %c0_20 = arith.constant 0 : index
    %53 = vector.load %arg9[%52, %c0_20] : memref<8x512xf32, #tpu.memory_space<vmem>>, vector<1x512xf32>
    %54 = vector.extract_strided_slice %49 {offsets = [0, 0], sizes = [1, 32], strides = [1, 1]} : vector<1x128xf32> to vector<1x32xf32>
    %55 = arith.truncf %54 : vector<1x32xf32> to vector<1x32xbf16>
    %c0_21 = arith.constant 0 : index
    %c0_22 = arith.constant 0 : index
    %56 = vector.load %arg4[%c0_21, %c0_22] : memref<32x512xbf16, #tpu.memory_space<vmem>>, vector<32x512xbf16>
    %cst_23 = arith.constant dense<0.000000e+00> : vector<1x512xf32>
    %57 = tpu.matmul %55, %56, %cst_23 {dimension_numbers = #tpu.dot_dimension_numbers<[1], [0], [0], [1], [0, 0, 1, 1], [], []>} : vector<1x32xbf16>, vector<32x512xbf16>, vector<1x512xf32> -> vector<1x512xf32>
    %58 = arith.addf %53, %57 : vector<1x512xf32>
    %59 = vector.extract_strided_slice %58 {offsets = [0, 0], sizes = [1, 128], strides = [1, 1]} : vector<1x512xf32> to vector<1x128xf32>
    %60 = arith.negf %59 : vector<1x128xf32>
    %61 = math.exp %60 : vector<1x128xf32>
    %cst_24 = arith.constant 1.000000e+00 : f32
    %62 = vector.broadcast %cst_24 : f32 to vector<1x128xf32>
    %63 = arith.addf %62, %61 : vector<1x128xf32>
    %64 = arith.divf %62, %63 : vector<1x128xf32>
    %65 = vector.extract_strided_slice %58 {offsets = [0, 128], sizes = [1, 128], strides = [1, 1]} : vector<1x512xf32> to vector<1x128xf32>
    %66 = arith.negf %65 : vector<1x128xf32>
    %67 = math.exp %66 : vector<1x128xf32>
    %cst_25 = arith.constant 1.000000e+00 : f32
    %68 = vector.broadcast %cst_25 : f32 to vector<1x128xf32>
    %69 = arith.addf %68, %67 : vector<1x128xf32>
    %70 = arith.divf %68, %69 : vector<1x128xf32>
    %71 = vector.extract_strided_slice %58 {offsets = [0, 256], sizes = [1, 128], strides = [1, 1]} : vector<1x512xf32> to vector<1x128xf32>
    %72 = math.tanh %71 : vector<1x128xf32>
    %73 = vector.extract_strided_slice %58 {offsets = [0, 384], sizes = [1, 128], strides = [1, 1]} : vector<1x512xf32> to vector<1x128xf32>
    %74 = arith.negf %73 : vector<1x128xf32>
    %75 = math.exp %74 : vector<1x128xf32>
    %cst_26 = arith.constant 1.000000e+00 : f32
    %76 = vector.broadcast %cst_26 : f32 to vector<1x128xf32>
    %77 = arith.addf %76, %75 : vector<1x128xf32>
    %78 = arith.divf %76, %77 : vector<1x128xf32>
    %79 = arith.mulf %70, %47 : vector<1x128xf32>
    %80 = arith.mulf %64, %72 : vector<1x128xf32>
    %81 = arith.addf %79, %80 : vector<1x128xf32>
    %82 = math.tanh %81 : vector<1x128xf32>
    %83 = arith.mulf %78, %82 : vector<1x128xf32>
    %84 = arith.index_cast %c1_i32 : i32 to index
    %c0_27 = arith.constant 0 : index
    %85 = vector.load %arg10[%84, %c0_27] : memref<8x128xf32, #tpu.memory_space<vmem>>, vector<1x128xf32>
    tpu.vector_store %arg10[%84, %c0_27], %83 {strides = array<i32>} : memref<8x128xf32, #tpu.memory_space<vmem>>, vector<1x128xf32>,
    %c2_i32 = arith.constant 2 : i32
    %86 = arith.index_cast %c2_i32 : i32 to index
    %c0_28 = arith.constant 0 : index
    %87 = vector.load %arg9[%86, %c0_28] : memref<8x512xf32, #tpu.memory_space<vmem>>, vector<1x512xf32>
    %88 = vector.extract_strided_slice %83 {offsets = [0, 0], sizes = [1, 32], strides = [1, 1]} : vector<1x128xf32> to vector<1x32xf32>
    %89 = arith.truncf %88 : vector<1x32xf32> to vector<1x32xbf16>
    %c0_29 = arith.constant 0 : index
    %c0_30 = arith.constant 0 : index
    %90 = vector.load %arg4[%c0_29, %c0_30] : memref<32x512xbf16, #tpu.memory_space<vmem>>, vector<32x512xbf16>
    %cst_31 = arith.constant dense<0.000000e+00> : vector<1x512xf32>
    %91 = tpu.matmul %89, %90, %cst_31 {dimension_numbers = #tpu.dot_dimension_numbers<[1], [0], [0], [1], [0, 0, 1, 1], [], []>} : vector<1x32xbf16>, vector<32x512xbf16>, vector<1x512xf32> -> vector<1x512xf32>
    %92 = arith.addf %87, %91 : vector<1x512xf32>
    %93 = vector.extract_strided_slice %92 {offsets = [0, 0], sizes = [1, 128], strides = [1, 1]} : vector<1x512xf32> to vector<1x128xf32>
    %94 = arith.negf %93 : vector<1x128xf32>
    %95 = math.exp %94 : vector<1x128xf32>
    %cst_32 = arith.constant 1.000000e+00 : f32
    %96 = vector.broadcast %cst_32 : f32 to vector<1x128xf32>
    %97 = arith.addf %96, %95 : vector<1x128xf32>
    %98 = arith.divf %96, %97 : vector<1x128xf32>
    %99 = vector.extract_strided_slice %92 {offsets = [0, 128], sizes = [1, 128], strides = [1, 1]} : vector<1x512xf32> to vector<1x128xf32>
    %100 = arith.negf %99 : vector<1x128xf32>
    %101 = math.exp %100 : vector<1x128xf32>
    %cst_33 = arith.constant 1.000000e+00 : f32
    %102 = vector.broadcast %cst_33 : f32 to vector<1x128xf32>
    %103 = arith.addf %102, %101 : vector<1x128xf32>
    %104 = arith.divf %102, %103 : vector<1x128xf32>
    %105 = vector.extract_strided_slice %92 {offsets = [0, 256], sizes = [1, 128], strides = [1, 1]} : vector<1x512xf32> to vector<1x128xf32>
    %106 = math.tanh %105 : vector<1x128xf32>
    %107 = vector.extract_strided_slice %92 {offsets = [0, 384], sizes = [1, 128], strides = [1, 1]} : vector<1x512xf32> to vector<1x128xf32>
    %108 = arith.negf %107 : vector<1x128xf32>
    %109 = math.exp %108 : vector<1x128xf32>
    %cst_34 = arith.constant 1.000000e+00 : f32
    %110 = vector.broadcast %cst_34 : f32 to vector<1x128xf32>
    %111 = arith.addf %110, %109 : vector<1x128xf32>
    %112 = arith.divf %110, %111 : vector<1x128xf32>
    %113 = arith.mulf %104, %81 : vector<1x128xf32>
    %114 = arith.mulf %98, %106 : vector<1x128xf32>
    %115 = arith.addf %113, %114 : vector<1x128xf32>
    %116 = math.tanh %115 : vector<1x128xf32>
    %117 = arith.mulf %112, %116 : vector<1x128xf32>
    %118 = arith.index_cast %c2_i32 : i32 to index
    %c0_35 = arith.constant 0 : index
    %119 = vector.load %arg10[%118, %c0_35] : memref<8x128xf32, #tpu.memory_space<vmem>>, vector<1x128xf32>
    tpu.vector_store %arg10[%118, %c0_35], %117 {strides = array<i32>} : memref<8x128xf32, #tpu.memory_space<vmem>>, vector<1x128xf32>,
    %c3_i32 = arith.constant 3 : i32
    %120 = arith.index_cast %c3_i32 : i32 to index
    %c0_36 = arith.constant 0 : index
    %121 = vector.load %arg9[%120, %c0_36] : memref<8x512xf32, #tpu.memory_space<vmem>>, vector<1x512xf32>
    %122 = vector.extract_strided_slice %117 {offsets = [0, 0], sizes = [1, 32], strides = [1, 1]} : vector<1x128xf32> to vector<1x32xf32>
    %123 = arith.truncf %122 : vector<1x32xf32> to vector<1x32xbf16>
    %c0_37 = arith.constant 0 : index
    %c0_38 = arith.constant 0 : index
    %124 = vector.load %arg4[%c0_37, %c0_38] : memref<32x512xbf16, #tpu.memory_space<vmem>>, vector<32x512xbf16>
    %cst_39 = arith.constant dense<0.000000e+00> : vector<1x512xf32>
    %125 = tpu.matmul %123, %124, %cst_39 {dimension_numbers = #tpu.dot_dimension_numbers<[1], [0], [0], [1], [0, 0, 1, 1], [], []>} : vector<1x32xbf16>, vector<32x512xbf16>, vector<1x512xf32> -> vector<1x512xf32>
    %126 = arith.addf %121, %125 : vector<1x512xf32>
    %127 = vector.extract_strided_slice %126 {offsets = [0, 0], sizes = [1, 128], strides = [1, 1]} : vector<1x512xf32> to vector<1x128xf32>
    %128 = arith.negf %127 : vector<1x128xf32>
    %129 = math.exp %128 : vector<1x128xf32>
    %cst_40 = arith.constant 1.000000e+00 : f32
    %130 = vector.broadcast %cst_40 : f32 to vector<1x128xf32>
    %131 = arith.addf %130, %129 : vector<1x128xf32>
    %132 = arith.divf %130, %131 : vector<1x128xf32>
    %133 = vector.extract_strided_slice %126 {offsets = [0, 128], sizes = [1, 128], strides = [1, 1]} : vector<1x512xf32> to vector<1x128xf32>
    %134 = arith.negf %133 : vector<1x128xf32>
    %135 = math.exp %134 : vector<1x128xf32>
    %cst_41 = arith.constant 1.000000e+00 : f32
    %136 = vector.broadcast %cst_41 : f32 to vector<1x128xf32>
    %137 = arith.addf %136, %135 : vector<1x128xf32>
    %138 = arith.divf %136, %137 : vector<1x128xf32>
    %139 = vector.extract_strided_slice %126 {offsets = [0, 256], sizes = [1, 128], strides = [1, 1]} : vector<1x512xf32> to vector<1x128xf32>
    %140 = math.tanh %139 : vector<1x128xf32>
    %141 = vector.extract_strided_slice %126 {offsets = [0, 384], sizes = [1, 128], strides = [1, 1]} : vector<1x512xf32> to vector<1x128xf32>
    %142 = arith.negf %141 : vector<1x128xf32>
    %143 = math.exp %142 : vector<1x128xf32>
    %cst_42 = arith.constant 1.000000e+00 : f32
    %144 = vector.broadcast %cst_42 : f32 to vector<1x128xf32>
    %145 = arith.addf %144, %143 : vector<1x128xf32>
    %146 = arith.divf %144, %145 : vector<1x128xf32>
    %147 = arith.mulf %138, %115 : vector<1x128xf32>
    %148 = arith.mulf %132, %140 : vector<1x128xf32>
    %149 = arith.addf %147, %148 : vector<1x128xf32>
    %150 = math.tanh %149 : vector<1x128xf32>
    %151 = arith.mulf %146, %150 : vector<1x128xf32>
    %152 = arith.index_cast %c3_i32 : i32 to index
    %c0_43 = arith.constant 0 : index
    %153 = vector.load %arg10[%152, %c0_43] : memref<8x128xf32, #tpu.memory_space<vmem>>, vector<1x128xf32>
    tpu.vector_store %arg10[%152, %c0_43], %151 {strides = array<i32>} : memref<8x128xf32, #tpu.memory_space<vmem>>, vector<1x128xf32>,
    %c4_i32 = arith.constant 4 : i32
    %154 = arith.index_cast %c4_i32 : i32 to index
    %c0_44 = arith.constant 0 : index
    %155 = vector.load %arg9[%154, %c0_44] : memref<8x512xf32, #tpu.memory_space<vmem>>, vector<1x512xf32>
    %156 = vector.extract_strided_slice %151 {offsets = [0, 0], sizes = [1, 32], strides = [1, 1]} : vector<1x128xf32> to vector<1x32xf32>
    %157 = arith.truncf %156 : vector<1x32xf32> to vector<1x32xbf16>
    %c0_45 = arith.constant 0 : index
    %c0_46 = arith.constant 0 : index
    %158 = vector.load %arg4[%c0_45, %c0_46] : memref<32x512xbf16, #tpu.memory_space<vmem>>, vector<32x512xbf16>
    %cst_47 = arith.constant dense<0.000000e+00> : vector<1x512xf32>
    %159 = tpu.matmul %157, %158, %cst_47 {dimension_numbers = #tpu.dot_dimension_numbers<[1], [0], [0], [1], [0, 0, 1, 1], [], []>} : vector<1x32xbf16>, vector<32x512xbf16>, vector<1x512xf32> -> vector<1x512xf32>
    %160 = arith.addf %155, %159 : vector<1x512xf32>
    %161 = vector.extract_strided_slice %160 {offsets = [0, 0], sizes = [1, 128], strides = [1, 1]} : vector<1x512xf32> to vector<1x128xf32>
    %162 = arith.negf %161 : vector<1x128xf32>
    %163 = math.exp %162 : vector<1x128xf32>
    %cst_48 = arith.constant 1.000000e+00 : f32
    %164 = vector.broadcast %cst_48 : f32 to vector<1x128xf32>
    %165 = arith.addf %164, %163 : vector<1x128xf32>
    %166 = arith.divf %164, %165 : vector<1x128xf32>
    %167 = vector.extract_strided_slice %160 {offsets = [0, 128], sizes = [1, 128], strides = [1, 1]} : vector<1x512xf32> to vector<1x128xf32>
    %168 = arith.negf %167 : vector<1x128xf32>
    %169 = math.exp %168 : vector<1x128xf32>
    %cst_49 = arith.constant 1.000000e+00 : f32
    %170 = vector.broadcast %cst_49 : f32 to vector<1x128xf32>
    %171 = arith.addf %170, %169 : vector<1x128xf32>
    %172 = arith.divf %170, %171 : vector<1x128xf32>
    %173 = vector.extract_strided_slice %160 {offsets = [0, 256], sizes = [1, 128], strides = [1, 1]} : vector<1x512xf32> to vector<1x128xf32>
    %174 = math.tanh %173 : vector<1x128xf32>
    %175 = vector.extract_strided_slice %160 {offsets = [0, 384], sizes = [1, 128], strides = [1, 1]} : vector<1x512xf32> to vector<1x128xf32>
    %176 = arith.negf %175 : vector<1x128xf32>
    %177 = math.exp %176 : vector<1x128xf32>
    %cst_50 = arith.constant 1.000000e+00 : f32
    %178 = vector.broadcast %cst_50 : f32 to vector<1x128xf32>
    %179 = arith.addf %178, %177 : vector<1x128xf32>
    %180 = arith.divf %178, %179 : vector<1x128xf32>
    %181 = arith.mulf %172, %149 : vector<1x128xf32>
    %182 = arith.mulf %166, %174 : vector<1x128xf32>
    %183 = arith.addf %181, %182 : vector<1x128xf32>
    %184 = math.tanh %183 : vector<1x128xf32>
    %185 = arith.mulf %180, %184 : vector<1x128xf32>
    %186 = arith.index_cast %c4_i32 : i32 to index
    %c0_51 = arith.constant 0 : index
    %187 = vector.load %arg10[%186, %c0_51] : memref<8x128xf32, #tpu.memory_space<vmem>>, vector<1x128xf32>
    tpu.vector_store %arg10[%186, %c0_51], %185 {strides = array<i32>} : memref<8x128xf32, #tpu.memory_space<vmem>>, vector<1x128xf32>,
    %c5_i32 = arith.constant 5 : i32
    %188 = arith.index_cast %c5_i32 : i32 to index
    %c0_52 = arith.constant 0 : index
    %189 = vector.load %arg9[%188, %c0_52] : memref<8x512xf32, #tpu.memory_space<vmem>>, vector<1x512xf32>
    %190 = vector.extract_strided_slice %185 {offsets = [0, 0], sizes = [1, 32], strides = [1, 1]} : vector<1x128xf32> to vector<1x32xf32>
    %191 = arith.truncf %190 : vector<1x32xf32> to vector<1x32xbf16>
    %c0_53 = arith.constant 0 : index
    %c0_54 = arith.constant 0 : index
    %192 = vector.load %arg4[%c0_53, %c0_54] : memref<32x512xbf16, #tpu.memory_space<vmem>>, vector<32x512xbf16>
    %cst_55 = arith.constant dense<0.000000e+00> : vector<1x512xf32>
    %193 = tpu.matmul %191, %192, %cst_55 {dimension_numbers = #tpu.dot_dimension_numbers<[1], [0], [0], [1], [0, 0, 1, 1], [], []>} : vector<1x32xbf16>, vector<32x512xbf16>, vector<1x512xf32> -> vector<1x512xf32>
    %194 = arith.addf %189, %193 : vector<1x512xf32>
    %195 = vector.extract_strided_slice %194 {offsets = [0, 0], sizes = [1, 128], strides = [1, 1]} : vector<1x512xf32> to vector<1x128xf32>
    %196 = arith.negf %195 : vector<1x128xf32>
    %197 = math.exp %196 : vector<1x128xf32>
    %cst_56 = arith.constant 1.000000e+00 : f32
    %198 = vector.broadcast %cst_56 : f32 to vector<1x128xf32>
    %199 = arith.addf %198, %197 : vector<1x128xf32>
    %200 = arith.divf %198, %199 : vector<1x128xf32>
    %201 = vector.extract_strided_slice %194 {offsets = [0, 128], sizes = [1, 128], strides = [1, 1]} : vector<1x512xf32> to vector<1x128xf32>
    %202 = arith.negf %201 : vector<1x128xf32>
    %203 = math.exp %202 : vector<1x128xf32>
    %cst_57 = arith.constant 1.000000e+00 : f32
    %204 = vector.broadcast %cst_57 : f32 to vector<1x128xf32>
    %205 = arith.addf %204, %203 : vector<1x128xf32>
    %206 = arith.divf %204, %205 : vector<1x128xf32>
    %207 = vector.extract_strided_slice %194 {offsets = [0, 256], sizes = [1, 128], strides = [1, 1]} : vector<1x512xf32> to vector<1x128xf32>
    %208 = math.tanh %207 : vector<1x128xf32>
    %209 = vector.extract_strided_slice %194 {offsets = [0, 384], sizes = [1, 128], strides = [1, 1]} : vector<1x512xf32> to vector<1x128xf32>
    %210 = arith.negf %209 : vector<1x128xf32>
    %211 = math.exp %210 : vector<1x128xf32>
    %cst_58 = arith.constant 1.000000e+00 : f32
    %212 = vector.broadcast %cst_58 : f32 to vector<1x128xf32>
    %213 = arith.addf %212, %211 : vector<1x128xf32>
    %214 = arith.divf %212, %213 : vector<1x128xf32>
    %215 = arith.mulf %206, %183 : vector<1x128xf32>
    %216 = arith.mulf %200, %208 : vector<1x128xf32>
    %217 = arith.addf %215, %216 : vector<1x128xf32>
    %218 = math.tanh %217 : vector<1x128xf32>
    %219 = arith.mulf %214, %218 : vector<1x128xf32>
    %220 = arith.index_cast %c5_i32 : i32 to index
    %c0_59 = arith.constant 0 : index
    %221 = vector.load %arg10[%220, %c0_59] : memref<8x128xf32, #tpu.memory_space<vmem>>, vector<1x128xf32>
    tpu.vector_store %arg10[%220, %c0_59], %219 {strides = array<i32>} : memref<8x128xf32, #tpu.memory_space<vmem>>, vector<1x128xf32>,
    %c6_i32 = arith.constant 6 : i32
    %222 = arith.index_cast %c6_i32 : i32 to index
    %c0_60 = arith.constant 0 : index
    %223 = vector.load %arg9[%222, %c0_60] : memref<8x512xf32, #tpu.memory_space<vmem>>, vector<1x512xf32>
    %224 = vector.extract_strided_slice %219 {offsets = [0, 0], sizes = [1, 32], strides = [1, 1]} : vector<1x128xf32> to vector<1x32xf32>
    %225 = arith.truncf %224 : vector<1x32xf32> to vector<1x32xbf16>
    %c0_61 = arith.constant 0 : index
    %c0_62 = arith.constant 0 : index
    %226 = vector.load %arg4[%c0_61, %c0_62] : memref<32x512xbf16, #tpu.memory_space<vmem>>, vector<32x512xbf16>
    %cst_63 = arith.constant dense<0.000000e+00> : vector<1x512xf32>
    %227 = tpu.matmul %225, %226, %cst_63 {dimension_numbers = #tpu.dot_dimension_numbers<[1], [0], [0], [1], [0, 0, 1, 1], [], []>} : vector<1x32xbf16>, vector<32x512xbf16>, vector<1x512xf32> -> vector<1x512xf32>
    %228 = arith.addf %223, %227 : vector<1x512xf32>
    %229 = vector.extract_strided_slice %228 {offsets = [0, 0], sizes = [1, 128], strides = [1, 1]} : vector<1x512xf32> to vector<1x128xf32>
    %230 = arith.negf %229 : vector<1x128xf32>
    %231 = math.exp %230 : vector<1x128xf32>
    %cst_64 = arith.constant 1.000000e+00 : f32
    %232 = vector.broadcast %cst_64 : f32 to vector<1x128xf32>
    %233 = arith.addf %232, %231 : vector<1x128xf32>
    %234 = arith.divf %232, %233 : vector<1x128xf32>
    %235 = vector.extract_strided_slice %228 {offsets = [0, 128], sizes = [1, 128], strides = [1, 1]} : vector<1x512xf32> to vector<1x128xf32>
    %236 = arith.negf %235 : vector<1x128xf32>
    %237 = math.exp %236 : vector<1x128xf32>
    %cst_65 = arith.constant 1.000000e+00 : f32
    %238 = vector.broadcast %cst_65 : f32 to vector<1x128xf32>
    %239 = arith.addf %238, %237 : vector<1x128xf32>
    %240 = arith.divf %238, %239 : vector<1x128xf32>
    %241 = vector.extract_strided_slice %228 {offsets = [0, 256], sizes = [1, 128], strides = [1, 1]} : vector<1x512xf32> to vector<1x128xf32>
    %242 = math.tanh %241 : vector<1x128xf32>
    %243 = vector.extract_strided_slice %228 {offsets = [0, 384], sizes = [1, 128], strides = [1, 1]} : vector<1x512xf32> to vector<1x128xf32>
    %244 = arith.negf %243 : vector<1x128xf32>
    %245 = math.exp %244 : vector<1x128xf32>
    %cst_66 = arith.constant 1.000000e+00 : f32
    %246 = vector.broadcast %cst_66 : f32 to vector<1x128xf32>
    %247 = arith.addf %246, %245 : vector<1x128xf32>
    %248 = arith.divf %246, %247 : vector<1x128xf32>
    %249 = arith.mulf %240, %217 : vector<1x128xf32>
    %250 = arith.mulf %234, %242 : vector<1x128xf32>
    %251 = arith.addf %249, %250 : vector<1x128xf32>
    %252 = math.tanh %251 : vector<1x128xf32>
    %253 = arith.mulf %248, %252 : vector<1x128xf32>
    %254 = arith.index_cast %c6_i32 : i32 to index
    %c0_67 = arith.constant 0 : index
    %255 = vector.load %arg10[%254, %c0_67] : memref<8x128xf32, #tpu.memory_space<vmem>>, vector<1x128xf32>
    tpu.vector_store %arg10[%254, %c0_67], %253 {strides = array<i32>} : memref<8x128xf32, #tpu.memory_space<vmem>>, vector<1x128xf32>,
    %c7_i32 = arith.constant 7 : i32
    %256 = arith.index_cast %c7_i32 : i32 to index
    %c0_68 = arith.constant 0 : index
    %257 = vector.load %arg9[%256, %c0_68] : memref<8x512xf32, #tpu.memory_space<vmem>>, vector<1x512xf32>
    %258 = vector.extract_strided_slice %253 {offsets = [0, 0], sizes = [1, 32], strides = [1, 1]} : vector<1x128xf32> to vector<1x32xf32>
    %259 = arith.truncf %258 : vector<1x32xf32> to vector<1x32xbf16>
    %c0_69 = arith.constant 0 : index
    %c0_70 = arith.constant 0 : index
    %260 = vector.load %arg4[%c0_69, %c0_70] : memref<32x512xbf16, #tpu.memory_space<vmem>>, vector<32x512xbf16>
    %cst_71 = arith.constant dense<0.000000e+00> : vector<1x512xf32>
    %261 = tpu.matmul %259, %260, %cst_71 {dimension_numbers = #tpu.dot_dimension_numbers<[1], [0], [0], [1], [0, 0, 1, 1], [], []>} : vector<1x32xbf16>, vector<32x512xbf16>, vector<1x512xf32> -> vector<1x512xf32>
    %262 = arith.addf %257, %261 : vector<1x512xf32>
    %263 = vector.extract_strided_slice %262 {offsets = [0, 0], sizes = [1, 128], strides = [1, 1]} : vector<1x512xf32> to vector<1x128xf32>
    %264 = arith.negf %263 : vector<1x128xf32>
    %265 = math.exp %264 : vector<1x128xf32>
    %cst_72 = arith.constant 1.000000e+00 : f32
    %266 = vector.broadcast %cst_72 : f32 to vector<1x128xf32>
    %267 = arith.addf %266, %265 : vector<1x128xf32>
    %268 = arith.divf %266, %267 : vector<1x128xf32>
    %269 = vector.extract_strided_slice %262 {offsets = [0, 128], sizes = [1, 128], strides = [1, 1]} : vector<1x512xf32> to vector<1x128xf32>
    %270 = arith.negf %269 : vector<1x128xf32>
    %271 = math.exp %270 : vector<1x128xf32>
    %cst_73 = arith.constant 1.000000e+00 : f32
    %272 = vector.broadcast %cst_73 : f32 to vector<1x128xf32>
    %273 = arith.addf %272, %271 : vector<1x128xf32>
    %274 = arith.divf %272, %273 : vector<1x128xf32>
    %275 = vector.extract_strided_slice %262 {offsets = [0, 256], sizes = [1, 128], strides = [1, 1]} : vector<1x512xf32> to vector<1x128xf32>
    %276 = math.tanh %275 : vector<1x128xf32>
    %277 = vector.extract_strided_slice %262 {offsets = [0, 384], sizes = [1, 128], strides = [1, 1]} : vector<1x512xf32> to vector<1x128xf32>
    %278 = arith.negf %277 : vector<1x128xf32>
    %279 = math.exp %278 : vector<1x128xf32>
    %cst_74 = arith.constant 1.000000e+00 : f32
    %280 = vector.broadcast %cst_74 : f32 to vector<1x128xf32>
    %281 = arith.addf %280, %279 : vector<1x128xf32>
    %282 = arith.divf %280, %281 : vector<1x128xf32>
    %283 = arith.mulf %274, %251 : vector<1x128xf32>
    %284 = arith.mulf %268, %276 : vector<1x128xf32>
    %285 = arith.addf %283, %284 : vector<1x128xf32>
    %286 = math.tanh %285 : vector<1x128xf32>
    %287 = arith.mulf %282, %286 : vector<1x128xf32>
    %288 = arith.index_cast %c7_i32 : i32 to index
    %c0_75 = arith.constant 0 : index
    %289 = vector.load %arg10[%288, %c0_75] : memref<8x128xf32, #tpu.memory_space<vmem>>, vector<1x128xf32>
    tpu.vector_store %arg10[%288, %c0_75], %287 {strides = array<i32>} : memref<8x128xf32, #tpu.memory_space<vmem>>, vector<1x128xf32>,
    %c8_i32 = arith.constant 8 : i32
    %c0_76 = arith.constant 0 : index
    %c0_77 = arith.constant 0 : index
    %290 = vector.load %arg10[%c0_76, %c0_77] : memref<8x128xf32, #tpu.memory_space<vmem>>, vector<8x128xf32>
    %291 = arith.truncf %290 : vector<8x128xf32> to vector<8x128xbf16>
    %c0_78 = arith.constant 0 : index
    %c0_79 = arith.constant 0 : index
    %292 = vector.load %arg6[%c0_78, %c0_79] : memref<128x128xbf16, #tpu.memory_space<vmem>>, vector<128x128xbf16>
    %cst_80 = arith.constant dense<0.000000e+00> : vector<8x128xf32>
    %293 = tpu.matmul %291, %292, %cst_80 {dimension_numbers = #tpu.dot_dimension_numbers<[1], [0], [0], [1], [0, 0, 1, 1], [], []>} : vector<8x128xbf16>, vector<128x128xbf16>, vector<8x128xf32> -> vector<8x128xf32>
    %c0_81 = arith.constant 0 : index
    %c0_82 = arith.constant 0 : index
    %294 = vector.load %arg7[%c0_81, %c0_82] : memref<1x128xf32, #tpu.memory_space<vmem>>, vector<1x128xf32>
    %295 = vector.broadcast %294 : vector<1x128xf32> to vector<8x128xf32>
    %296 = arith.addf %293, %295 : vector<8x128xf32>
    %cst_83 = arith.constant dense<0xFF800000> : vector<8xf32>
    %297 = vector.multi_reduction <maximumf>, %296, %cst_83 [1] : vector<8x128xf32> to vector<8xf32>
    %298 = vector.shape_cast %297 : vector<8xf32> to vector<8x1xf32>
    %299 = vector.broadcast %298 : vector<8x1xf32> to vector<8x128xf32>
    %300 = arith.subf %296, %299 : vector<8x128xf32>
    %301 = math.exp %300 : vector<8x128xf32>
    %cst_84 = arith.constant dense<0.000000e+00> : vector<8xf32>
    %302 = vector.multi_reduction <add>, %301, %cst_84 [1] : vector<8x128xf32> to vector<8xf32>
    %303 = vector.shape_cast %302 : vector<8xf32> to vector<8x1xf32>
    %304 = math.log %303 : vector<8x1xf32>
    %305 = vector.broadcast %304 : vector<8x1xf32> to vector<8x128xf32>
    %306 = arith.subf %300, %305 : vector<8x128xf32>
    %c0_85 = arith.constant 0 : index
    %c0_86 = arith.constant 0 : index
    %307 = vector.load %arg8[%c0_85, %c0_86] : memref<8x128xf32, #tpu.memory_space<vmem>>, vector<8x128xf32>
    tpu.vector_store %arg8[%c0_85, %c0_86], %306 {strides = array<i32>} : memref<8x128xf32, #tpu.memory_space<vmem>>, vector<8x128xf32>,
    return
  }
  func.func @transform_0(%arg0: i32) -> (i32, i32) {
    %c0_i32 = arith.constant 0 : i32
    %c0_i32_0 = arith.constant 0 : i32
    %c0_i32_1 = arith.constant 0 : i32
    return %c0_i32, %c0_i32_0 : i32, i32
  }
  func.func @transform_1(%arg0: i32) -> (i32, i32) {
    %c0_i32 = arith.constant 0 : i32
    %c0_i32_0 = arith.constant 0 : i32
    %c0_i32_1 = arith.constant 0 : i32
    return %c0_i32, %c0_i32_0 : i32, i32
  }
  func.func @transform_2(%arg0: i32) -> (i32, i32) {
    %c0_i32 = arith.constant 0 : i32
    %c0_i32_0 = arith.constant 0 : i32
    %c0_i32_1 = arith.constant 0 : i32
    return %c0_i32, %c0_i32_0 : i32, i32
  }
  func.func @transform_3(%arg0: i32) -> (i32, i32) {
    %c0_i32 = arith.constant 0 : i32
    %c0_i32_0 = arith.constant 0 : i32
    %c0_i32_1 = arith.constant 0 : i32
    return %c0_i32, %c0_i32_0 : i32, i32
  }
  func.func @transform_4(%arg0: i32) -> (i32, i32) {
    %c0_i32 = arith.constant 0 : i32
    %c0_i32_0 = arith.constant 0 : i32
    %c0_i32_1 = arith.constant 0 : i32
    return %c0_i32, %c0_i32_0 : i32, i32
  }
  func.func @transform_5(%arg0: i32) -> (i32, i32) {
    %c0_i32 = arith.constant 0 : i32
    %c0_i32_0 = arith.constant 0 : i32
    %c0_i32_1 = arith.constant 0 : i32
    return %c0_i32, %c0_i32_0 : i32, i32
  }
  func.func @transform_6(%arg0: i32) -> (i32, i32) {
    %c0_i32 = arith.constant 0 : i32
    %c0_i32_0 = arith.constant 0 : i32
    %c0_i32_1 = arith.constant 0 : i32
    return %c0_i32, %c0_i32_0 : i32, i32
  }
  func.func @transform_7(%arg0: i32) -> (i32, i32) {
    %c0_i32 = arith.constant 0 : i32
    %c0_i32_0 = arith.constant 0 : i32
    %c0_i32_1 = arith.constant 0 : i32
    return %c0_i32, %c0_i32_0 : i32, i32
  }
}

</mosaic_0001>

<llo_original>
// kernel: wiki_classifier_forward.1
$region0: #{wiki_classifier_forward.1}
  #allocation0 [shape = 'u32[]', space=smem, size = 0x4, offset = 0x4, fixed_abs, tag = 'smem constant byte address 0x4 - core index']
  #allocation1 [shape = 'u32[144,128]{1,0:T(1,128)}', space=vmem, size = 0x12000, scoped, tag = 'internal scratch']
  #allocation2 [shape = 'f32[8,512]{1,0:T(8,128)}', space=vmem, size = 0x4000, scoped, tag = 'scratch operand']
  #allocation3 [shape = 'f32[8,128]{1,0:T(8,128)}', space=vmem, size = 0x1000, scoped, tag = 'scratch operand']
  %s0 = inlined_call_operand.vmem [shape: s32[8,1], index: 0, kind: input, shape index: {}]
  %s1 = inlined_call_operand.vmem [shape: bf16[128,32], index: 1, kind: input, shape index: {}]
  %s2 = inlined_call_operand.vmem [shape: bf16[32,512], index: 2, kind: input, shape index: {}]
  %s3 = inlined_call_operand.hbm [shape: bf16[32,512], index: 3, kind: input, shape index: {}]
  %s4 = inlined_call_operand.vmem [shape: f32[1,512], index: 4, kind: input, shape index: {}]
  %s5 = inlined_call_operand.hbm [shape: bf16[128,128], index: 5, kind: input, shape index: {}]
  %s6 = inlined_call_operand.vmem [shape: f32[1,128], index: 6, kind: input, shape index: {}]
  %s7 = inlined_call_operand.hbm [shape: f32[8,128], index: 7, kind: output, shape index: {}]
  %s8 = sld [smem:[#allocation0]]
  $region46: #{wiki_classifier_forward.1} parent=0
    _
  %s10 = ssub.s32 1, %s8
  %s11 = scalar_select 0, %s10, %s8
  $region1: #{wiki_classifier_forward.1} parent=0
    #allocation4 [shape = 'u8[32768]{0}', space=vmem, size = 0x8000, scoped, tag = 'input window, operand 3, single buffered']
    #allocation5 [shape = 's32[1]{0}', space=sflag, size = 0x4, scoped, tag = 'scoped memory for wiki_classifier_forward.1']
    #allocation6 [shape = 's32[1]{0}', space=sflag, size = 0x4, scoped, tag = 'scoped memory for wiki_classifier_forward.1']
    #allocation7 [shape = 'u8[32768]{0}', space=vmem, size = 0x8000, scoped, tag = 'input window, operand 5, single buffered']
    #allocation8 [shape = 's32[1]{0}', space=sflag, size = 0x4, scoped, tag = 'scoped memory for wiki_classifier_forward.1']
    #allocation9 [shape = 'u8[4096]{0}', space=vmem, size = 0x1000, scoped, tag = 'output window, operand 0, single buffered']
    %12 = vsyncpa [#allocation5], 0
    %13 = vsyncpa [#allocation8], 0
    %14 = vsyncpa [#allocation6], 0
    // Predicated region
    $region2: #{wiki_classifier_forward.1} parent=1 // pred_check
      _
    $region3: #{wiki_classifier_forward.1} parent=1 // pred_check_branch
      %16 = sbr.rel (0) target = $region5
    $region4: #{wiki_classifier_forward.1} parent=1 // pred_region
      _
    $region5: #{wiki_classifier_forward.1} parent=1 // pred_fallthru
      _
    // Predicated region
    $region6: #{wiki_classifier_forward.1} parent=1 // pred_check
      _
    $region7: #{wiki_classifier_forward.1} parent=1 // pred_check_branch
      %18 = sbr.rel (0) target = $region9
    $region8: #{wiki_classifier_forward.1} parent=1 // pred_region
      _
    $region9: #{wiki_classifier_forward.1} parent=1 // pred_fallthru
      _
    // Predicated region
    $region10: #{wiki_classifier_forward.1} parent=1 // pred_check
      _
    $region11: #{wiki_classifier_forward.1} parent=1 // pred_check_branch
      %20 = sbr.rel (0) target = $region13
    $region12: #{wiki_classifier_forward.1} parent=1 // pred_region
      _
    $region13: #{wiki_classifier_forward.1} parent=1 // pred_fallthru
      _
    // Predicated region
    $region14: #{wiki_classifier_forward.1} parent=1 // pred_check
      _
    $region15: #{wiki_classifier_forward.1} parent=1 // pred_check_branch
      %22 = sbr.rel (0) target = $region17
    $region16: #{wiki_classifier_forward.1} parent=1 // pred_region
      %s24 = ssub.s32 1024, 1024
      %25 = vsyncadd [#allocation5], %s24
      %s26 = sshll.u32 [#allocation4], 4
      %s27 = int_to_ptr.vmem [resolvable:$true] %s26
      %32 = dma.hbm_to_vmem [thread:$0]  %s3, 1024, %s27, [#allocation5], 256, 256, 16
    $region17: #{wiki_classifier_forward.1} parent=1 // pred_fallthru
      _
    // Predicated region
    $region18: #{wiki_classifier_forward.1} parent=1 // pred_check
      _
    $region19: #{wiki_classifier_forward.1} parent=1 // pred_check_branch
      %34 = sbr.rel (0) target = $region21
    $region20: #{wiki_classifier_forward.1} parent=1 // pred_region
      _
    $region21: #{wiki_classifier_forward.1} parent=1 // pred_fallthru
      _
    // Predicated region
    $region22: #{wiki_classifier_forward.1} parent=1 // pred_check
      _
    $region23: #{wiki_classifier_forward.1} parent=1 // pred_check_branch
      %36 = sbr.rel (0) target = $region25
    $region24: #{wiki_classifier_forward.1} parent=1 // pred_region
      %s38 = ssub.s32 1024, 1024
      %39 = vsyncadd [#allocation8], %s38
      %s40 = sshll.u32 [#allocation7], 4
      %s41 = int_to_ptr.vmem [resolvable:$true] %s40
      %46 = dma.hbm_to_vmem [thread:$0]  %s5, 1024, %s41, [#allocation8], 64, 64, 4
    $region25: #{wiki_classifier_forward.1} parent=1 // pred_fallthru
      _
    // Predicated region
    $region26: #{wiki_classifier_forward.1} parent=1 // pred_check
      _
    $region27: #{wiki_classifier_forward.1} parent=1 // pred_check_branch
      %48 = sbr.rel (0) target = $region29
    $region28: #{wiki_classifier_forward.1} parent=1 // pred_region
      _
    $region29: #{wiki_classifier_forward.1} parent=1 // pred_fallthru
      _
    // Predicated region
    $region30: #{wiki_classifier_forward.1} parent=1 // pred_check
      _
    $region31: #{wiki_classifier_forward.1} parent=1 // pred_check_branch
      %50 = sbr.rel (0) target = $region33
    $region32: #{wiki_classifier_forward.1} parent=1 // pred_region
      %51 = dma.done [#allocation5], 1024
    $region33: #{wiki_classifier_forward.1} parent=1 // pred_fallthru
      _
    // Predicated region
    $region34: #{wiki_classifier_forward.1} parent=1 // pred_check
      _
    $region35: #{wiki_classifier_forward.1} parent=1 // pred_check_branch
      %53 = sbr.rel (0) target = $region37
    $region36: #{wiki_classifier_forward.1} parent=1 // pred_region
      %54 = dma.done [#allocation8], 1024
    $region37: #{wiki_classifier_forward.1} parent=1 // pred_fallthru
      _
    %v56 = vld [vmem:[%s0] sm:$0xff]
    %v57 = vlaneseq
    %v58 = vand.u32 %v57, 127
    %59 = vset.pattern.permute.xlu0 0
    %60 = vperm.xlu0 %59, %v56
    %v61 = vpop.permute.xlu0 %60
    %vm62 = vcmp.eq.s32.totalorder %v58, %v61
    %v63 = vsel %vm62, 1, 0
    %v64 = vcvt.s32.f32 %v63
    %v65 = vpack.c.bf16 %v64, %v64
    %v66 = vld [vmem:[%s1] sm:$0xf]
    %v67 = vld [vmem:[%s1 + $0x4] sm:$0xf]
    %v68 = vld [vmem:[%s1 + $0x8] sm:$0xf]
    %v69 = vld [vmem:[%s1 + $0xc] sm:$0xf]
    %v70 = vld [vmem:[%s1 + $0x10] sm:$0xf]
    %v71 = vld [vmem:[%s1 + $0x14] sm:$0xf]
    %v72 = vld [vmem:[%s1 + $0x18] sm:$0xf]
    %v73 = vld [vmem:[%s1 + $0x1c] sm:$0xf]
    %v74 = vld [vmem:[%s1 + $0x20] sm:$0xf]
    %v75 = vld [vmem:[%s1 + $0x24] sm:$0xf]
    %v76 = vld [vmem:[%s1 + $0x28] sm:$0xf]
    %v77 = vld [vmem:[%s1 + $0x2c] sm:$0xf]
    %v78 = vld [vmem:[%s1 + $0x30] sm:$0xf]
    %v79 = vld [vmem:[%s1 + $0x34] sm:$0xf]
    %v80 = vld [vmem:[%s1 + $0x38] sm:$0xf]
    %v81 = vld [vmem:[%s1 + $0x3c] sm:$0xf]
    %v98 = vunpack.c.l.b16 %v66
    %v99 = vunpack.c.l.b16 %v67
    %v100 = vunpack.c.l.b16 %v68
    %v101 = vunpack.c.l.b16 %v69
    %v102 = vunpack.c.l.b16 %v70
    %v103 = vunpack.c.l.b16 %v71
    %v104 = vunpack.c.l.b16 %v72
    %v105 = vunpack.c.l.b16 %v73
    %v106 = vunpack.c.l.b16 %v74
    %v107 = vunpack.c.l.b16 %v75
    %v108 = vunpack.c.l.b16 %v76
    %v109 = vunpack.c.l.b16 %v77
    %v110 = vunpack.c.l.b16 %v78
    %v111 = vunpack.c.l.b16 %v79
    %v112 = vunpack.c.l.b16 %v80
    %v113 = vunpack.c.l.b16 %v81
    %v114 = vpack.c.b16 %v99, %v98
    %v115 = vpack.c.b16 %v101, %v100
    %v116 = vpack.c.b16 %v103, %v102
    %v117 = vpack.c.b16 %v105, %v104
    %v118 = vpack.c.b16 %v107, %v106
    %v119 = vpack.c.b16 %v109, %v108
    %v120 = vpack.c.b16 %v111, %v110
    %v121 = vpack.c.b16 %v113, %v112
    %130 = vmatprep.subr.bf16.mxu0 0
    %131 = vmatpush1.bf16.msra.mxu0 %v114
    %132 = vmatprep.subr.bf16.mxu0 0
    %133 = vmatpush1.bf16.msra.mxu0 %v115
    %134 = vmatprep.subr.bf16.mxu0 0
    %135 = vmatpush1.bf16.msra.mxu0 %v116
    %136 = vmatprep.subr.bf16.mxu0 0
    %137 = vmatpush1.bf16.msra.mxu0 %v117
    %138 = vmatprep.subr.bf16.mxu0 0
    %139 = vmatpush1.bf16.msra.mxu0 %v118
    %140 = vmatprep.subr.bf16.mxu0 0
    %141 = vmatpush1.bf16.msra.mxu0 %v119
    %142 = vmatprep.subr.bf16.mxu0 0
    %143 = vmatpush1.bf16.msra.mxu0 %v120
    %144 = vmatprep.subr.bf16.mxu0 0
    %145 = vmatpush1.bf16.msra.mxu0 %v121
    %146 = vmatprep.subr.bf16.mxu0 0
    %147 = vmatpush1.bf16.msra.mxu0 0
    %148 = vmatprep.subr.bf16.mxu0 0
    %149 = vmatpush1.bf16.msra.mxu0 0
    %150 = vmatprep.subr.bf16.mxu0 0
    %151 = vmatpush1.bf16.msra.mxu0 0
    %152 = vmatprep.subr.bf16.mxu0 0
    %153 = vmatpush1.bf16.msra.mxu0 0
    %154 = vmatprep.subr.bf16.mxu0 0
    %155 = vmatpush1.bf16.msra.mxu0 0
    %156 = vmatprep.subr.bf16.mxu0 0
    %157 = vmatpush1.bf16.msra.mxu0 0
    %158 = vmatprep.subr.bf16.mxu0 0
    %159 = vmatpush1.bf16.msra.mxu0 0
    %160 = vmatprep.subr.bf16.mxu0 0
    %161 = vmatpush1.bf16.msra.mxu0 0
    %162 = vmatprep.mubr.bf16.mxu0 0
    %163 = vmatmul.mubr.bf16.gmra.mrb[0].mxu0 %v65
    %v164 = vpop.f32.mrb[0].mxu0
    %v165 = vadd.f32 0.0, %v164
    %v166 = vpop.f32.mrb[0].mxu0
    %v167 = vpop.f32.mrb[0].mxu0
    %v168 = vpop.f32.mrb[0].mxu0
    %169 = vdwg.mxu0
    %v170 = vpack.c.bf16 %v165, %v165
    %v171 = vld [vmem:[%s2] sm:$0xff]
    %v172 = vld [vmem:[%s2 + $0x8] sm:$0xff]
    %v173 = vld [vmem:[%s2 + $0x10] sm:$0xff]
    %v174 = vld [vmem:[%s2 + $0x18] sm:$0xff]
    %v175 = vld [vmem:[%s2 + $0x20] sm:$0xff]
    %v176 = vld [vmem:[%s2 + $0x28] sm:$0xff]
    %v177 = vld [vmem:[%s2 + $0x30] sm:$0xff]
    %v178 = vld [vmem:[%s2 + $0x38] sm:$0xff]
    %v179 = vld [vmem:[%s4] sm:$0xf]
    %v181 = vlaneseq
    %v182 = vshrl.u32 %v181, 7
    %v183 = vsub.s32 0, %v182
    %v184 = vrot.slane %v179, %v183
    %v185 = vlaneseq
    %v186 = vshrl.u32 %v185, 7
    %v187 = vsub.s32 1, %v186
    %v188 = vrot.slane %v179, %v187
    %v189 = vlaneseq
    %v190 = vshrl.u32 %v189, 7
    %v191 = vsub.s32 2, %v190
    %v192 = vrot.slane %v179, %v191
    %v193 = vlaneseq
    %v194 = vshrl.u32 %v193, 7
    %v195 = vsub.s32 3, %v194
    %v196 = vrot.slane %v179, %v195
    %v209 = vunpack.c.l.b16 %v171
    %v210 = vunpack.c.h.b16 %v171
    %v211 = vunpack.c.l.b16 %v172
    %v212 = vunpack.c.h.b16 %v172
    %v213 = vunpack.c.l.b16 %v173
    %v214 = vunpack.c.h.b16 %v173
    %v215 = vunpack.c.l.b16 %v174
    %v216 = vunpack.c.h.b16 %v174
    %v217 = vunpack.c.l.b16 %v175
    %v218 = vunpack.c.h.b16 %v175
    %v219 = vunpack.c.l.b16 %v176
    %v220 = vunpack.c.h.b16 %v176
    %v221 = vunpack.c.l.b16 %v177
    %v222 = vunpack.c.h.b16 %v177
    %v223 = vunpack.c.l.b16 %v178
    %v224 = vunpack.c.h.b16 %v178
    %v225 = vpack.c.b16 %v213, %v209
    %v226 = vpack.c.b16 %v214, %v210
    %v227 = vpack.c.b16 %v215, %v211
    %v228 = vpack.c.b16 %v216, %v212
    %v229 = vpack.c.b16 %v221, %v217
    %v230 = vpack.c.b16 %v222, %v218
    %v231 = vpack.c.b16 %v223, %v219
    %v232 = vpack.c.b16 %v224, %v220
    %vm241 = vcmask 261120
    %v243 = vsel %vm241, %v170, 0
    %245 = vmatprep.subr.bf16.mxu0 %v226
    %246 = vmatpush1.bf16.msra.mxu0 %v225
    %247 = vmatprep.subr.bf16.mxu0 %v230
    %248 = vmatpush1.bf16.msra.mxu0 %v229
    %249 = vmatprep.subr.bf16.mxu0 0
    %250 = vmatpush1.bf16.msra.mxu0 0
    %251 = vmatprep.subr.bf16.mxu0 0
    %252 = vmatpush1.bf16.msra.mxu0 0
    %253 = vmatprep.subr.bf16.mxu0 0
    %254 = vmatpush1.bf16.msra.mxu0 0
    %255 = vmatprep.subr.bf16.mxu0 0
    %256 = vmatpush1.bf16.msra.mxu0 0
    %257 = vmatprep.subr.bf16.mxu0 0
    %258 = vmatpush1.bf16.msra.mxu0 0
    %259 = vmatprep.subr.bf16.mxu0 0
    %260 = vmatpush1.bf16.msra.mxu0 0
    %261 = vmatprep.subr.bf16.mxu0 0
    %262 = vmatpush1.bf16.msra.mxu0 0
    %263 = vmatprep.subr.bf16.mxu0 0
    %264 = vmatpush1.bf16.msra.mxu0 0
    %265 = vmatprep.subr.bf16.mxu0 0
    %266 = vmatpush1.bf16.msra.mxu0 0
    %267 = vmatprep.subr.bf16.mxu0 0
    %268 = vmatpush1.bf16.msra.mxu0 0
    %269 = vmatprep.subr.bf16.mxu0 0
    %270 = vmatpush1.bf16.msra.mxu0 0
    %271 = vmatprep.subr.bf16.mxu0 0
    %272 = vmatpush1.bf16.msra.mxu0 0
    %273 = vmatprep.subr.bf16.mxu0 0
    %274 = vmatpush1.bf16.msra.mxu0 0
    %275 = vmatprep.subr.bf16.mxu0 0
    %276 = vmatpush1.bf16.msra.mxu0 0
    %277 = vmatprep.mubr.bf16.mxu0 0
    %278 = vmatmul.mubr.bf16.gmra.mrb[0].mxu0 %v243
    %v279 = vpop.f32.mrb[0].mxu0
    %v280 = vadd.f32 %v184, %v279
    %v281 = vpop.f32.mrb[0].mxu0
    %v282 = vadd.f32 %v188, %v281
    %v283 = vpop.f32.mrb[0].mxu0
    %v284 = vpop.f32.mrb[0].mxu0
    %285 = vdwg.mxu0
    %286 = vmatprep.subr.bf16.mxu0 %v228
    %287 = vmatpush1.bf16.msra.mxu0 %v227
    %288 = vmatprep.subr.bf16.mxu0 %v232
    %289 = vmatpush1.bf16.msra.mxu0 %v231
    %290 = vmatprep.subr.bf16.mxu0 0
    %291 = vmatpush1.bf16.msra.mxu0 0
    %292 = vmatprep.subr.bf16.mxu0 0
    %293 = vmatpush1.bf16.msra.mxu0 0
    %294 = vmatprep.subr.bf16.mxu0 0
    %295 = vmatpush1.bf16.msra.mxu0 0
    %296 = vmatprep.subr.bf16.mxu0 0
    %297 = vmatpush1.bf16.msra.mxu0 0
    %298 = vmatprep.subr.bf16.mxu0 0
    %299 = vmatpush1.bf16.msra.mxu0 0
    %300 = vmatprep.subr.bf16.mxu0 0
    %301 = vmatpush1.bf16.msra.mxu0 0
    %302 = vmatprep.subr.bf16.mxu0 0
    %303 = vmatpush1.bf16.msra.mxu0 0
    %304 = vmatprep.subr.bf16.mxu0 0
    %305 = vmatpush1.bf16.msra.mxu0 0
    %306 = vmatprep.subr.bf16.mxu0 0
    %307 = vmatpush1.bf16.msra.mxu0 0
    %308 = vmatprep.subr.bf16.mxu0 0
    %309 = vmatpush1.bf16.msra.mxu0 0
    %310 = vmatprep.subr.bf16.mxu0 0
    %311 = vmatpush1.bf16.msra.mxu0 0
    %312 = vmatprep.subr.bf16.mxu0 0
    %313 = vmatpush1.bf16.msra.mxu0 0
    %314 = vmatprep.subr.bf16.mxu0 0
    %315 = vmatpush1.bf16.msra.mxu0 0
    %316 = vmatprep.subr.bf16.mxu0 0
    %317 = vmatpush1.bf16.msra.mxu0 0
    %318 = vmatprep.mubr.bf16.mxu0 0
    %319 = vmatmul.mubr.bf16.gmra.mrb[0].mxu0 %v243
    %v320 = vpop.f32.mrb[0].mxu0
    %v321 = vadd.f32 %v192, %v320
    %v322 = vpop.f32.mrb[0].mxu0
    %v323 = vadd.f32 %v196, %v322
    %v324 = vpop.f32.mrb[0].mxu0
    %v325 = vpop.f32.mrb[0].mxu0
    %326 = vdwg.mxu0
    %327 = vst [vmem:[#allocation2] sm:$0xff] %v280
    %328 = vst [vmem:[#allocation2 + $0x8] sm:$0xff] %v282
    %329 = vst [vmem:[#allocation2 + $0x10] sm:$0xff] %v321
    %330 = vst [vmem:[#allocation2 + $0x18] sm:$0xff] %v323
    %v331 = vld [vmem:[#allocation2] ss:$8 sm:$0xf]
    %v332 = vld [vmem:[#allocation4] sm:$0xff]
    %v333 = vld [vmem:[#allocation4 + $0x8] sm:$0xff]
    %v334 = vld [vmem:[#allocation4 + $0x10] sm:$0xff]
    %v335 = vld [vmem:[#allocation4 + $0x18] sm:$0xff]
    %v336 = vld [vmem:[#allocation4 + $0x20] sm:$0xff]
    %v337 = vld [vmem:[#allocation4 + $0x28] sm:$0xff]
    %v338 = vld [vmem:[#allocation4 + $0x30] sm:$0xff]
    %v339 = vld [vmem:[#allocation4 + $0x38] sm:$0xff]
    %v348 = vunpack.c.l.b16 %v332
    %v349 = vunpack.c.h.b16 %v332
    %v350 = vunpack.c.l.b16 %v333
    %v351 = vunpack.c.h.b16 %v333
    %v352 = vunpack.c.l.b16 %v334
    %v353 = vunpack.c.h.b16 %v334
    %v354 = vunpack.c.l.b16 %v335
    %v355 = vunpack.c.h.b16 %v335
    %v356 = vunpack.c.l.b16 %v336
    %v357 = vunpack.c.h.b16 %v336
    %v358 = vunpack.c.l.b16 %v337
    %v359 = vunpack.c.h.b16 %v337
    %v360 = vunpack.c.l.b16 %v338
    %v361 = vunpack.c.h.b16 %v338
    %v362 = vunpack.c.l.b16 %v339
    %v363 = vunpack.c.h.b16 %v339
    %v364 = vpack.c.b16 %v352, %v348
    %v365 = vpack.c.b16 %v353, %v349
    %v366 = vpack.c.b16 %v354, %v350
    %v367 = vpack.c.b16 %v355, %v351
    %v368 = vpack.c.b16 %v360, %v356
    %v369 = vpack.c.b16 %v361, %v357
    %v370 = vpack.c.b16 %v362, %v358
    %v371 = vpack.c.b16 %v363, %v359
    %v381 = vsel %vm241, 0, 0
    %383 = vmatprep.subr.bf16.mxu0 %v365
    %384 = vmatpush1.bf16.msra.mxu0 %v364
    %385 = vmatprep.subr.bf16.mxu0 %v369
    %386 = vmatpush1.bf16.msra.mxu0 %v368
    %387 = vmatprep.subr.bf16.mxu0 0
    %388 = vmatpush1.bf16.msra.mxu0 0
    %389 = vmatprep.subr.bf16.mxu0 0
    %390 = vmatpush1.bf16.msra.mxu0 0
    %391 = vmatprep.subr.bf16.mxu0 0
    %392 = vmatpush1.bf16.msra.mxu0 0
    %393 = vmatprep.subr.bf16.mxu0 0
    %394 = vmatpush1.bf16.msra.mxu0 0
    %395 = vmatprep.subr.bf16.mxu0 0
    %396 = vmatpush1.bf16.msra.mxu0 0
    %397 = vmatprep.subr.bf16.mxu0 0
    %398 = vmatpush1.bf16.msra.mxu0 0
    %399 = vmatprep.subr.bf16.mxu0 0
    %400 = vmatpush1.bf16.msra.mxu0 0
    %401 = vmatprep.subr.bf16.mxu0 0
    %402 = vmatpush1.bf16.msra.mxu0 0
    %403 = vmatprep.subr.bf16.mxu0 0
    %404 = vmatpush1.bf16.msra.mxu0 0
    %405 = vmatprep.subr.bf16.mxu0 0
    %406 = vmatpush1.bf16.msra.mxu0 0
    %407 = vmatprep.subr.bf16.mxu0 0
    %408 = vmatpush1.bf16.msra.mxu0 0
    %409 = vmatprep.subr.bf16.mxu0 0
    %410 = vmatpush1.bf16.msra.mxu0 0
    %411 = vmatprep.subr.bf16.mxu0 0
    %412 = vmatpush1.bf16.msra.mxu0 0
    %413 = vmatprep.subr.bf16.mxu0 0
    %414 = vmatpush1.bf16.msra.mxu0 0
    %415 = vmatprep.mubr.bf16.mxu0 0
    %416 = vmatmul.mubr.bf16.gmra.mrb[0].mxu0 %v381
    %v417 = vpop.f32.mrb[0].mxu0
    %v418 = vadd.f32 0.0, %v417
    %v419 = vpop.f32.mrb[0].mxu0
    %v420 = vadd.f32 0.0, %v419
    %v421 = vpop.f32.mrb[0].mxu0
    %v422 = vpop.f32.mrb[0].mxu0
    %423 = vdwg.mxu0
    %424 = vmatprep.subr.bf16.mxu0 %v367
    %425 = vmatpush1.bf16.msra.mxu0 %v366
    %426 = vmatprep.subr.bf16.mxu0 %v371
    %427 = vmatpush1.bf16.msra.mxu0 %v370
    %428 = vmatprep.subr.bf16.mxu0 0
    %429 = vmatpush1.bf16.msra.mxu0 0
    %430 = vmatprep.subr.bf16.mxu0 0
    %431 = vmatpush1.bf16.msra.mxu0 0
    %432 = vmatprep.subr.bf16.mxu0 0
    %433 = vmatpush1.bf16.msra.mxu0 0
    %434 = vmatprep.subr.bf16.mxu0 0
    %435 = vmatpush1.bf16.msra.mxu0 0
    %436 = vmatprep.subr.bf16.mxu0 0
    %437 = vmatpush1.bf16.msra.mxu0 0
    %438 = vmatprep.subr.bf16.mxu0 0
    %439 = vmatpush1.bf16.msra.mxu0 0
    %440 = vmatprep.subr.bf16.mxu0 0
    %441 = vmatpush1.bf16.msra.mxu0 0
    %442 = vmatprep.subr.bf16.mxu0 0
    %443 = vmatpush1.bf16.msra.mxu0 0
    %444 = vmatprep.subr.bf16.mxu0 0
    %445 = vmatpush1.bf16.msra.mxu0 0
    %446 = vmatprep.subr.bf16.mxu0 0
    %447 = vmatpush1.bf16.msra.mxu0 0
    %448 = vmatprep.subr.bf16.mxu0 0
    %449 = vmatpush1.bf16.msra.mxu0 0
    %450 = vmatprep.subr.bf16.mxu0 0
    %451 = vmatpush1.bf16.msra.mxu0 0
    %452 = vmatprep.subr.bf16.mxu0 0
    %453 = vmatpush1.bf16.msra.mxu0 0
    %454 = vmatprep.subr.bf16.mxu0 0
    %455 = vmatpush1.bf16.msra.mxu0 0
    %456 = vmatprep.mubr.bf16.mxu0 0
    %457 = vmatmul.mubr.bf16.gmra.mrb[0].mxu0 %v381
    %v458 = vpop.f32.mrb[0].mxu0
    %v459 = vadd.f32 0.0, %v458
    %v460 = vpop.f32.mrb[0].mxu0
    %v461 = vadd.f32 0.0, %v460
    %v462 = vpop.f32.mrb[0].mxu0
    %v463 = vpop.f32.mrb[0].mxu0
    %464 = vdwg.mxu0
    %v469 = vcombine.low %v418, %v420
    %v470 = vcombine.low %v459, %v461
    %v472 = vunpack.c.l.s4 1966171168
    %v473 = vunpack.c.0.s8 %v472
    %v474 = vlaneseq
    %v475 = vshrl.u32 %v474, 7
    %v476 = vsub.s32 %v473, %v475
    %v477 = vrot.slane %v469, %v476
    %v479 = vunpack.c.l.s4 1966171168
    %v480 = vunpack.c.0.s8 %v479
    %v481 = vlaneseq
    %v482 = vshrl.u32 %v481, 7
    %v483 = vsub.s32 %v480, %v482
    %v484 = vrot.slane %v470, %v483
    %v485 = vcombine.low %v477, %v484
    %v487 = vunpack.c.l.s4 1966171168
    %v488 = vunpack.c.0.s8 %v487
    %v489 = vlaneseq
    %v490 = vshrl.u32 %v489, 7
    %v491 = vsub.s32 %v488, %v490
    %v492 = vrot.slane %v485, %v491
    %v494 = vadd.f32 %v331, %v492
    %v495 = vxor.u32 %v494, 2147483648
    %v496 = vmul.f32 %v495, 1.442695
    %v497 = vpow.pop %v496
    %v498 = vadd.f32 %v497, 1.0
    %v499 = vrcp.pop %v498
    %v500 = vmul.f32 1.0, %v499
    %v502 = vrot.slane %v494, 1
    %v504 = vxor.u32 %v502, 2147483648
    %v505 = vmul.f32 %v504, 1.442695
    %v506 = vpow.pop %v505
    %v507 = vadd.f32 %v506, 1.0
    %v508 = vrcp.pop %v507
    %v509 = vmul.f32 1.0, %v508
    %v510 = vrot.slane %v494, 2
    %v512 = vtanh.pop %v510
    %v513 = vrot.slane %v494, 3
    %v515 = vxor.u32 %v513, 2147483648
    %v516 = vmul.f32 %v515, 1.442695
    %v517 = vpow.pop %v516
    %v518 = vadd.f32 %v517, 1.0
    %v519 = vrcp.pop %v518
    %v520 = vmul.f32 1.0, %v519
    %v521 = vmul.f32 %v509, 0.0
    %v522 = vmul.f32 %v500, %v512
    %v523 = vadd.f32 %v521, %v522
    %v524 = vtanh.pop %v523
    %v525 = vmul.f32 %v520, %v524
    %526 = vst [vmem:[#allocation3] sm:$0x1] %v525
    %s527 = scalar_lea.vmem [#allocation2], 1
    %v528 = vld [vmem:[%s527] ss:$8 sm:$0xf]
    %v529 = vpack.c.bf16 %v525, %v525
    %v530 = vld [vmem:[#allocation4] sm:$0xff]
    %v531 = vld [vmem:[#allocation4 + $0x8] sm:$0xff]
    %v532 = vld [vmem:[#allocation4 + $0x10] sm:$0xff]
    %v533 = vld [vmem:[#allocation4 + $0x18] sm:$0xff]
    %v534 = vld [vmem:[#allocation4 + $0x20] sm:$0xff]
    %v535 = vld [vmem:[#allocation4 + $0x28] sm:$0xff]
    %v536 = vld [vmem:[#allocation4 + $0x30] sm:$0xff]
    %v537 = vld [vmem:[#allocation4 + $0x38] sm:$0xff]
    %v546 = vunpack.c.l.b16 %v530
    %v547 = vunpack.c.h.b16 %v530
    %v548 = vunpack.c.l.b16 %v531
    %v549 = vunpack.c.h.b16 %v531
    %v550 = vunpack.c.l.b16 %v532
    %v551 = vunpack.c.h.b16 %v532
    %v552 = vunpack.c.l.b16 %v533
    %v553 = vunpack.c.h.b16 %v533
    %v554 = vunpack.c.l.b16 %v534
    %v555 = vunpack.c.h.b16 %v534
    %v556 = vunpack.c.l.b16 %v535
    %v557 = vunpack.c.h.b16 %v535
    %v558 = vunpack.c.l.b16 %v536
    %v559 = vunpack.c.h.b16 %v536
    %v560 = vunpack.c.l.b16 %v537
    %v561 = vunpack.c.h.b16 %v537
    %v562 = vpack.c.b16 %v550, %v546
    %v563 = vpack.c.b16 %v551, %v547
    %v564 = vpack.c.b16 %v552, %v548
    %v565 = vpack.c.b16 %v553, %v549
    %v566 = vpack.c.b16 %v558, %v554
    %v567 = vpack.c.b16 %v559, %v555
    %v568 = vpack.c.b16 %v560, %v556
    %v569 = vpack.c.b16 %v561, %v557
    %v579 = vsel %vm241, %v529, 0
    %581 = vmatprep.subr.bf16.mxu0 %v563
    %582 = vmatpush1.bf16.msra.mxu0 %v562
    %583 = vmatprep.subr.bf16.mxu0 %v567
    %584 = vmatpush1.bf16.msra.mxu0 %v566
    %585 = vmatprep.subr.bf16.mxu0 0
    %586 = vmatpush1.bf16.msra.mxu0 0
    %587 = vmatprep.subr.bf16.mxu0 0
    %588 = vmatpush1.bf16.msra.mxu0 0
    %589 = vmatprep.subr.bf16.mxu0 0
    %590 = vmatpush1.bf16.msra.mxu0 0
    %591 = vmatprep.subr.bf16.mxu0 0
    %592 = vmatpush1.bf16.msra.mxu0 0
    %593 = vmatprep.subr.bf16.mxu0 0
    %594 = vmatpush1.bf16.msra.mxu0 0
    %595 = vmatprep.subr.bf16.mxu0 0
    %596 = vmatpush1.bf16.msra.mxu0 0
    %597 = vmatprep.subr.bf16.mxu0 0
    %598 = vmatpush1.bf16.msra.mxu0 0
    %599 = vmatprep.subr.bf16.mxu0 0
    %600 = vmatpush1.bf16.msra.mxu0 0
    %601 = vmatprep.subr.bf16.mxu0 0
    %602 = vmatpush1.bf16.msra.mxu0 0
    %603 = vmatprep.subr.bf16.mxu0 0
    %604 = vmatpush1.bf16.msra.mxu0 0
    %605 = vmatprep.subr.bf16.mxu0 0
    %606 = vmatpush1.bf16.msra.mxu0 0
    %607 = vmatprep.subr.bf16.mxu0 0
    %608 = vmatpush1.bf16.msra.mxu0 0
    %609 = vmatprep.subr.bf16.mxu0 0
    %610 = vmatpush1.bf16.msra.mxu0 0
    %611 = vmatprep.subr.bf16.mxu0 0
    %612 = vmatpush1.bf16.msra.mxu0 0
    %613 = vmatprep.mubr.bf16.mxu0 0
    %614 = vmatmul.mubr.bf16.gmra.mrb[0].mxu0 %v579
    %v615 = vpop.f32.mrb[0].mxu0
    %v616 = vadd.f32 0.0, %v615
    %v617 = vpop.f32.mrb[0].mxu0
    %v618 = vadd.f32 0.0, %v617
    %v619 = vpop.f32.mrb[0].mxu0
    %v620 = vpop.f32.mrb[0].mxu0
    %621 = vdwg.mxu0
    %622 = vmatprep.subr.bf16.mxu0 %v565
    %623 = vmatpush1.bf16.msra.mxu0 %v564
    %624 = vmatprep.subr.bf16.mxu0 %v569
    %625 = vmatpush1.bf16.msra.mxu0 %v568
    %626 = vmatprep.subr.bf16.mxu0 0
    %627 = vmatpush1.bf16.msra.mxu0 0
    %628 = vmatprep.subr.bf16.mxu0 0
    %629 = vmatpush1.bf16.msra.mxu0 0
    %630 = vmatprep.subr.bf16.mxu0 0
    %631 = vmatpush1.bf16.msra.mxu0 0
    %632 = vmatprep.subr.bf16.mxu0 0
    %633 = vmatpush1.bf16.msra.mxu0 0
    %634 = vmatprep.subr.bf16.mxu0 0
    %635 = vmatpush1.bf16.msra.mxu0 0
    %636 = vmatprep.subr.bf16.mxu0 0
    %637 = vmatpush1.bf16.msra.mxu0 0
    %638 = vmatprep.subr.bf16.mxu0 0
    %639 = vmatpush1.bf16.msra.mxu0 0
    %640 = vmatprep.subr.bf16.mxu0 0
    %641 = vmatpush1.bf16.msra.mxu0 0
    %642 = vmatprep.subr.bf16.mxu0 0
    %643 = vmatpush1.bf16.msra.mxu0 0
    %644 = vmatprep.subr.bf16.mxu0 0
    %645 = vmatpush1.bf16.msra.mxu0 0
    %646 = vmatprep.subr.bf16.mxu0 0
    %647 = vmatpush1.bf16.msra.mxu0 0
    %648 = vmatprep.subr.bf16.mxu0 0
    %649 = vmatpush1.bf16.msra.mxu0 0
    %650 = vmatprep.subr.bf16.mxu0 0
    %651 = vmatpush1.bf16.msra.mxu0 0
    %652 = vmatprep.subr.bf16.mxu0 0
    %653 = vmatpush1.bf16.msra.mxu0 0
    %654 = vmatprep.mubr.bf16.mxu0 0
    %655 = vmatmul.mubr.bf16.gmra.mrb[0].mxu0 %v579
    %v656 = vpop.f32.mrb[0].mxu0
    %v657 = vadd.f32 0.0, %v656
    %v658 = vpop.f32.mrb[0].mxu0
    %v659 = vadd.f32 0.0, %v658
    %v660 = vpop.f32.mrb[0].mxu0
    %v661 = vpop.f32.mrb[0].mxu0
    %662 = vdwg.mxu0
    %v667 = vcombine.low %v616, %v618
    %v668 = vcombine.low %v657, %v659
    %v670 = vunpack.c.l.s4 1966171168
    %v671 = vunpack.c.0.s8 %v670
    %v672 = vlaneseq
    %v673 = vshrl.u32 %v672, 7
    %v674 = vsub.s32 %v671, %v673
    %v675 = vrot.slane %v667, %v674
    %v677 = vunpack.c.l.s4 1966171168
    %v678 = vunpack.c.0.s8 %v677
    %v679 = vlaneseq
    %v680 = vshrl.u32 %v679, 7
    %v681 = vsub.s32 %v678, %v680
    %v682 = vrot.slane %v668, %v681
    %v683 = vcombine.low %v675, %v682
    %v685 = vunpack.c.l.s4 1966171168
    %v686 = vunpack.c.0.s8 %v685
    %v687 = vlaneseq
    %v688 = vshrl.u32 %v687, 7
    %v689 = vsub.s32 %v686, %v688
    %v690 = vrot.slane %v683, %v689
    %v692 = vadd.f32 %v528, %v690
    %v693 = vxor.u32 %v692, 2147483648
    %v694 = vmul.f32 %v693, 1.442695
    %v695 = vpow.pop %v694
    %v696 = vadd.f32 %v695, 1.0
    %v697 = vrcp.pop %v696
    %v698 = vmul.f32 1.0, %v697
    %v700 = vrot.slane %v692, 1
    %v702 = vxor.u32 %v700, 2147483648
    %v703 = vmul.f32 %v702, 1.442695
    %v704 = vpow.pop %v703
    %v705 = vadd.f32 %v704, 1.0
    %v706 = vrcp.pop %v705
    %v707 = vmul.f32 1.0, %v706
    %v708 = vrot.slane %v692, 2
    %v710 = vtanh.pop %v708
    %v711 = vrot.slane %v692, 3
    %v713 = vxor.u32 %v711, 2147483648
    %v714 = vmul.f32 %v713, 1.442695
    %v715 = vpow.pop %v714
    %v716 = vadd.f32 %v715, 1.0
    %v717 = vrcp.pop %v716
    %v718 = vmul.f32 1.0, %v717
    %v719 = vmul.f32 %v707, %v523
    %v720 = vmul.f32 %v698, %v710
    %v721 = vadd.f32 %v719, %v720
    %v722 = vtanh.pop %v721
    %v723 = vmul.f32 %v718, %v722
    %724 = vst [vmem:[#allocation3 + $0x1] sm:$0x1] %v723
    %s725 = scalar_lea.vmem [#allocation2], 2
    %v726 = vld [vmem:[%s725] ss:$8 sm:$0xf]
    %v727 = vpack.c.bf16 %v723, %v723
    %v728 = vld [vmem:[#allocation4] sm:$0xff]
    %v729 = vld [vmem:[#allocation4 + $0x8] sm:$0xff]
    %v730 = vld [vmem:[#allocation4 + $0x10] sm:$0xff]
    %v731 = vld [vmem:[#allocation4 + $0x18] sm:$0xff]
    %v732 = vld [vmem:[#allocation4 + $0x20] sm:$0xff]
    %v733 = vld [vmem:[#allocation4 + $0x28] sm:$0xff]
    %v734 = vld [vmem:[#allocation4 + $0x30] sm:$0xff]
    %v735 = vld [vmem:[#allocation4 + $0x38] sm:$0xff]
    %v744 = vunpack.c.l.b16 %v728
    %v745 = vunpack.c.h.b16 %v728
    %v746 = vunpack.c.l.b16 %v729
    %v747 = vunpack.c.h.b16 %v729
    %v748 = vunpack.c.l.b16 %v730
    %v749 = vunpack.c.h.b16 %v730
    %v750 = vunpack.c.l.b16 %v731
    %v751 = vunpack.c.h.b16 %v731
    %v752 = vunpack.c.l.b16 %v732
    %v753 = vunpack.c.h.b16 %v732
    %v754 = vunpack.c.l.b16 %v733
    %v755 = vunpack.c.h.b16 %v733
    %v756 = vunpack.c.l.b16 %v734
    %v757 = vunpack.c.h.b16 %v734
    %v758 = vunpack.c.l.b16 %v735
    %v759 = vunpack.c.h.b16 %v735
    %v760 = vpack.c.b16 %v748, %v744
    %v761 = vpack.c.b16 %v749, %v745
    %v762 = vpack.c.b16 %v750, %v746
    %v763 = vpack.c.b16 %v751, %v747
    %v764 = vpack.c.b16 %v756, %v752
    %v765 = vpack.c.b16 %v757, %v753
    %v766 = vpack.c.b16 %v758, %v754
    %v767 = vpack.c.b16 %v759, %v755
    %v777 = vsel %vm241, %v727, 0
    %779 = vmatprep.subr.bf16.mxu0 %v761
    %780 = vmatpush1.bf16.msra.mxu0 %v760
    %781 = vmatprep.subr.bf16.mxu0 %v765
    %782 = vmatpush1.bf16.msra.mxu0 %v764
    %783 = vmatprep.subr.bf16.mxu0 0
    %784 = vmatpush1.bf16.msra.mxu0 0
    %785 = vmatprep.subr.bf16.mxu0 0
    %786 = vmatpush1.bf16.msra.mxu0 0
    %787 = vmatprep.subr.bf16.mxu0 0
    %788 = vmatpush1.bf16.msra.mxu0 0
    %789 = vmatprep.subr.bf16.mxu0 0
    %790 = vmatpush1.bf16.msra.mxu0 0
    %791 = vmatprep.subr.bf16.mxu0 0
    %792 = vmatpush1.bf16.msra.mxu0 0
    %793 = vmatprep.subr.bf16.mxu0 0
    %794 = vmatpush1.bf16.msra.mxu0 0
    %795 = vmatprep.subr.bf16.mxu0 0
    %796 = vmatpush1.bf16.msra.mxu0 0
    %797 = vmatprep.subr.bf16.mxu0 0
    %798 = vmatpush1.bf16.msra.mxu0 0
    %799 = vmatprep.subr.bf16.mxu0 0
    %800 = vmatpush1.bf16.msra.mxu0 0
    %801 = vmatprep.subr.bf16.mxu0 0
    %802 = vmatpush1.bf16.msra.mxu0 0
    %803 = vmatprep.subr.bf16.mxu0 0
    %804 = vmatpush1.bf16.msra.mxu0 0
    %805 = vmatprep.subr.bf16.mxu0 0
    %806 = vmatpush1.bf16.msra.mxu0 0
    %807 = vmatprep.subr.bf16.mxu0 0
    %808 = vmatpush1.bf16.msra.mxu0 0
    %809 = vmatprep.subr.bf16.mxu0 0
    %810 = vmatpush1.bf16.msra.mxu0 0
    %811 = vmatprep.mubr.bf16.mxu0 0
    %812 = vmatmul.mubr.bf16.gmra.mrb[0].mxu0 %v777
    %v813 = vpop.f32.mrb[0].mxu0
    %v814 = vadd.f32 0.0, %v813
    %v815 = vpop.f32.mrb[0].mxu0
    %v816 = vadd.f32 0.0, %v815
    %v817 = vpop.f32.mrb[0].mxu0
    %v818 = vpop.f32.mrb[0].mxu0
    %819 = vdwg.mxu0
    %820 = vmatprep.subr.bf16.mxu0 %v763
    %821 = vmatpush1.bf16.msra.mxu0 %v762
    %822 = vmatprep.subr.bf16.mxu0 %v767
    %823 = vmatpush1.bf16.msra.mxu0 %v766
    %824 = vmatprep.subr.bf16.mxu0 0
    %825 = vmatpush1.bf16.msra.mxu0 0
    %826 = vmatprep.subr.bf16.mxu0 0
    %827 = vmatpush1.bf16.msra.mxu0 0
    %828 = vmatprep.subr.bf16.mxu0 0
    %829 = vmatpush1.bf16.msra.mxu0 0
    %830 = vmatprep.subr.bf16.mxu0 0
    %831 = vmatpush1.bf16.msra.mxu0 0
    %832 = vmatprep.subr.bf16.mxu0 0
    %833 = vmatpush1.bf16.msra.mxu0 0
    %834 = vmatprep.subr.bf16.mxu0 0
    %835 = vmatpush1.bf16.msra.mxu0 0
    %836 = vmatprep.subr.bf16.mxu0 0
    %837 = vmatpush1.bf16.msra.mxu0 0
    %838 = vmatprep.subr.bf16.mxu0 0
    %839 = vmatpush1.bf16.msra.mxu0 0
    %840 = vmatprep.subr.bf16.mxu0 0
    %841 = vmatpush1.bf16.msra.mxu0 0
    %842 = vmatprep.subr.bf16.mxu0 0
    %843 = vmatpush1.bf16.msra.mxu0 0
    %844 = vmatprep.subr.bf16.mxu0 0
    %845 = vmatpush1.bf16.msra.mxu0 0
    %846 = vmatprep.subr.bf16.mxu0 0
    %847 = vmatpush1.bf16.msra.mxu0 0
    %848 = vmatprep.subr.bf16.mxu0 0
    %849 = vmatpush1.bf16.msra.mxu0 0
    %850 = vmatprep.subr.bf16.mxu0 0
    %851 = vmatpush1.bf16.msra.mxu0 0
    %852 = vmatprep.mubr.bf16.mxu0 0
    %853 = vmatmul.mubr.bf16.gmra.mrb[0].mxu0 %v777
    %v854 = vpop.f32.mrb[0].mxu0
    %v855 = vadd.f32 0.0, %v854
    %v856 = vpop.f32.mrb[0].mxu0
    %v857 = vadd.f32 0.0, %v856
    %v858 = vpop.f32.mrb[0].mxu0
    %v859 = vpop.f32.mrb[0].mxu0
    %860 = vdwg.mxu0
    %v865 = vcombine.low %v814, %v816
    %v866 = vcombine.low %v855, %v857
    %v868 = vunpack.c.l.s4 1966171168
    %v869 = vunpack.c.0.s8 %v868
    %v870 = vlaneseq
    %v871 = vshrl.u32 %v870, 7
    %v872 = vsub.s32 %v869, %v871
    %v873 = vrot.slane %v865, %v872
    %v875 = vunpack.c.l.s4 1966171168
    %v876 = vunpack.c.0.s8 %v875
    %v877 = vlaneseq
    %v878 = vshrl.u32 %v877, 7
    %v879 = vsub.s32 %v876, %v878
    %v880 = vrot.slane %v866, %v879
    %v881 = vcombine.low %v873, %v880
    %v883 = vunpack.c.l.s4 1966171168
    %v884 = vunpack.c.0.s8 %v883
    %v885 = vlaneseq
    %v886 = vshrl.u32 %v885, 7
    %v887 = vsub.s32 %v884, %v886
    %v888 = vrot.slane %v881, %v887
    %v890 = vadd.f32 %v726, %v888
    %v891 = vxor.u32 %v890, 2147483648
    %v892 = vmul.f32 %v891, 1.442695
    %v893 = vpow.pop %v892
    %v894 = vadd.f32 %v893, 1.0
    %v895 = vrcp.pop %v894
    %v896 = vmul.f32 1.0, %v895
    %v898 = vrot.slane %v890, 1
    %v900 = vxor.u32 %v898, 2147483648
    %v901 = vmul.f32 %v900, 1.442695
    %v902 = vpow.pop %v901
    %v903 = vadd.f32 %v902, 1.0
    %v904 = vrcp.pop %v903
    %v905 = vmul.f32 1.0, %v904
    %v906 = vrot.slane %v890, 2
    %v908 = vtanh.pop %v906
    %v909 = vrot.slane %v890, 3
    %v911 = vxor.u32 %v909, 2147483648
    %v912 = vmul.f32 %v911, 1.442695
    %v913 = vpow.pop %v912
    %v914 = vadd.f32 %v913, 1.0
    %v915 = vrcp.pop %v914
    %v916 = vmul.f32 1.0, %v915
    %v917 = vmul.f32 %v905, %v721
    %v918 = vmul.f32 %v896, %v908
    %v919 = vadd.f32 %v917, %v918
    %v920 = vtanh.pop %v919
    %v921 = vmul.f32 %v916, %v920
    %922 = vst [vmem:[#allocation3 + $0x2] sm:$0x1] %v921
    %s923 = scalar_lea.vmem [#allocation2], 3
    %v924 = vld [vmem:[%s923] ss:$8 sm:$0xf]
    %v925 = vpack.c.bf16 %v921, %v921
    %v926 = vld [vmem:[#allocation4] sm:$0xff]
    %v927 = vld [vmem:[#allocation4 + $0x8] sm:$0xff]
    %v928 = vld [vmem:[#allocation4 + $0x10] sm:$0xff]
    %v929 = vld [vmem:[#allocation4 + $0x18] sm:$0xff]
    %v930 = vld [vmem:[#allocation4 + $0x20] sm:$0xff]
    %v931 = vld [vmem:[#allocation4 + $0x28] sm:$0xff]
    %v932 = vld [vmem:[#allocation4 + $0x30] sm:$0xff]
    %v933 = vld [vmem:[#allocation4 + $0x38] sm:$0xff]
    %v942 = vunpack.c.l.b16 %v926
    %v943 = vunpack.c.h.b16 %v926
    %v944 = vunpack.c.l.b16 %v927
    %v945 = vunpack.c.h.b16 %v927
    %v946 = vunpack.c.l.b16 %v928
    %v947 = vunpack.c.h.b16 %v928
    %v948 = vunpack.c.l.b16 %v929
    %v949 = vunpack.c.h.b16 %v929
    %v950 = vunpack.c.l.b16 %v930
    %v951 = vunpack.c.h.b16 %v930
    %v952 = vunpack.c.l.b16 %v931
    %v953 = vunpack.c.h.b16 %v931
    %v954 = vunpack.c.l.b16 %v932
    %v955 = vunpack.c.h.b16 %v932
    %v956 = vunpack.c.l.b16 %v933
    %v957 = vunpack.c.h.b16 %v933
    %v958 = vpack.c.b16 %v946, %v942
    %v959 = vpack.c.b16 %v947, %v943
    %v960 = vpack.c.b16 %v948, %v944
    %v961 = vpack.c.b16 %v949, %v945
    %v962 = vpack.c.b16 %v954, %v950
    %v963 = vpack.c.b16 %v955, %v951
    %v964 = vpack.c.b16 %v956, %v952
    %v965 = vpack.c.b16 %v957, %v953
    %v975 = vsel %vm241, %v925, 0
    %977 = vmatprep.subr.bf16.mxu0 %v959
    %978 = vmatpush1.bf16.msra.mxu0 %v958
    %979 = vmatprep.subr.bf16.mxu0 %v963
    %980 = vmatpush1.bf16.msra.mxu0 %v962
    %981 = vmatprep.subr.bf16.mxu0 0
    %982 = vmatpush1.bf16.msra.mxu0 0
    %983 = vmatprep.subr.bf16.mxu0 0
    %984 = vmatpush1.bf16.msra.mxu0 0
    %985 = vmatprep.subr.bf16.mxu0 0
    %986 = vmatpush1.bf16.msra.mxu0 0
    %987 = vmatprep.subr.bf16.mxu0 0
    %988 = vmatpush1.bf16.msra.mxu0 0
    %989 = vmatprep.subr.bf16.mxu0 0
    %990 = vmatpush1.bf16.msra.mxu0 0
    %991 = vmatprep.subr.bf16.mxu0 0
    %992 = vmatpush1.bf16.msra.mxu0 0
    %993 = vmatprep.subr.bf16.mxu0 0
    %994 = vmatpush1.bf16.msra.mxu0 0
    %995 = vmatprep.subr.bf16.mxu0 0
    %996 = vmatpush1.bf16.msra.mxu0 0
    %997 = vmatprep.subr.bf16.mxu0 0
    %998 = vmatpush1.bf16.msra.mxu0 0
    %999 = vmatprep.subr.bf16.mxu0 0
    %1000 = vmatpush1.bf16.msra.mxu0 0
    %1001 = vmatprep.subr.bf16.mxu0 0
    %1002 = vmatpush1.bf16.msra.mxu0 0
    %1003 = vmatprep.subr.bf16.mxu0 0
    %1004 = vmatpush1.bf16.msra.mxu0 0
    %1005 = vmatprep.subr.bf16.mxu0 0
    %1006 = vmatpush1.bf16.msra.mxu0 0
    %1007 = vmatprep.subr.bf16.mxu0 0
    %1008 = vmatpush1.bf16.msra.mxu0 0
    %1009 = vmatprep.mubr.bf16.mxu0 0
    %1010 = vmatmul.mubr.bf16.gmra.mrb[0].mxu0 %v975
    %v1011 = vpop.f32.mrb[0].mxu0
    %v1012 = vadd.f32 0.0, %v1011
    %v1013 = vpop.f32.mrb[0].mxu0
    %v1014 = vadd.f32 0.0, %v1013
    %v1015 = vpop.f32.mrb[0].mxu0
    %v1016 = vpop.f32.mrb[0].mxu0
    %1017 = vdwg.mxu0
    %1018 = vmatprep.subr.bf16.mxu0 %v961
    %1019 = vmatpush1.bf16.msra.mxu0 %v960
    %1020 = vmatprep.subr.bf16.mxu0 %v965
    %1021 = vmatpush1.bf16.msra.mxu0 %v964
    %1022 = vmatprep.subr.bf16.mxu0 0
    %1023 = vmatpush1.bf16.msra.mxu0 0
    %1024 = vmatprep.subr.bf16.mxu0 0
    %1025 = vmatpush1.bf16.msra.mxu0 0
    %1026 = vmatprep.subr.bf16.mxu0 0
    %1027 = vmatpush1.bf16.msra.mxu0 0
    %1028 = vmatprep.subr.bf16.mxu0 0
    %1029 = vmatpush1.bf16.msra.mxu0 0
    %1030 = vmatprep.subr.bf16.mxu0 0
    %1031 = vmatpush1.bf16.msra.mxu0 0
    %1032 = vmatprep.subr.bf16.mxu0 0
    %1033 = vmatpush1.bf16.msra.mxu0 0
    %1034 = vmatprep.subr.bf16.mxu0 0
    %1035 = vmatpush1.bf16.msra.mxu0 0
    %1036 = vmatprep.subr.bf16.mxu0 0
    %1037 = vmatpush1.bf16.msra.mxu0 0
    %1038 = vmatprep.subr.bf16.mxu0 0
    %1039 = vmatpush1.bf16.msra.mxu0 0
    %1040 = vmatprep.subr.bf16.mxu0 0
    %1041 = vmatpush1.bf16.msra.mxu0 0
    %1042 = vmatprep.subr.bf16.mxu0 0
    %1043 = vmatpush1.bf16.msra.mxu0 0
    %1044 = vmatprep.subr.bf16.mxu0 0
    %1045 = vmatpush1.bf16.msra.mxu0 0
    %1046 = vmatprep.subr.bf16.mxu0 0
    %1047 = vmatpush1.bf16.msra.mxu0 0
    %1048 = vmatprep.subr.bf16.mxu0 0
    %1049 = vmatpush1.bf16.msra.mxu0 0
    %1050 = vmatprep.mubr.bf16.mxu0 0
    %1051 = vmatmul.mubr.bf16.gmra.mrb[0].mxu0 %v975
    %v1052 = vpop.f32.mrb[0].mxu0
    %v1053 = vadd.f32 0.0, %v1052
    %v1054 = vpop.f32.mrb[0].mxu0
    %v1055 = vadd.f32 0.0, %v1054
    %v1056 = vpop.f32.mrb[0].mxu0
    %v1057 = vpop.f32.mrb[0].mxu0
    %1058 = vdwg.mxu0
    %v1063 = vcombine.low %v1012, %v1014
    %v1064 = vcombine.low %v1053, %v1055
    %v1066 = vunpack.c.l.s4 1966171168
    %v1067 = vunpack.c.0.s8 %v1066
    %v1068 = vlaneseq
    %v1069 = vshrl.u32 %v1068, 7
    %v1070 = vsub.s32 %v1067, %v1069
    %v1071 = vrot.slane %v1063, %v1070
    %v1073 = vunpack.c.l.s4 1966171168
    %v1074 = vunpack.c.0.s8 %v1073
    %v1075 = vlaneseq
    %v1076 = vshrl.u32 %v1075, 7
    %v1077 = vsub.s32 %v1074, %v1076
    %v1078 = vrot.slane %v1064, %v1077
    %v1079 = vcombine.low %v1071, %v1078
    %v1081 = vunpack.c.l.s4 1966171168
    %v1082 = vunpack.c.0.s8 %v1081
    %v1083 = vlaneseq
    %v1084 = vshrl.u32 %v1083, 7
    %v1085 = vsub.s32 %v1082, %v1084
    %v1086 = vrot.slane %v1079, %v1085
    %v1088 = vadd.f32 %v924, %v1086
    %v1089 = vxor.u32 %v1088, 2147483648
    %v1090 = vmul.f32 %v1089, 1.442695
    %v1091 = vpow.pop %v1090
    %v1092 = vadd.f32 %v1091, 1.0
    %v1093 = vrcp.pop %v1092
    %v1094 = vmul.f32 1.0, %v1093
    %v1096 = vrot.slane %v1088, 1
    %v1098 = vxor.u32 %v1096, 2147483648
    %v1099 = vmul.f32 %v1098, 1.442695
    %v1100 = vpow.pop %v1099
    %v1101 = vadd.f32 %v1100, 1.0
    %v1102 = vrcp.pop %v1101
    %v1103 = vmul.f32 1.0, %v1102
    %v1104 = vrot.slane %v1088, 2
    %v1106 = vtanh.pop %v1104
    %v1107 = vrot.slane %v1088, 3
    %v1109 = vxor.u32 %v1107, 2147483648
    %v1110 = vmul.f32 %v1109, 1.442695
    %v1111 = vpow.pop %v1110
    %v1112 = vadd.f32 %v1111, 1.0
    %v1113 = vrcp.pop %v1112
    %v1114 = vmul.f32 1.0, %v1113
    %v1115 = vmul.f32 %v1103, %v919
    %v1116 = vmul.f32 %v1094, %v1106
    %v1117 = vadd.f32 %v1115, %v1116
    %v1118 = vtanh.pop %v1117
    %v1119 = vmul.f32 %v1114, %v1118
    %1120 = vst [vmem:[#allocation3 + $0x3] sm:$0x1] %v1119
    %s1121 = scalar_lea.vmem [#allocation2], 4
    %v1122 = vld [vmem:[%s1121] ss:$8 sm:$0xf]
    %v1123 = vpack.c.bf16 %v1119, %v1119
    %v1124 = vld [vmem:[#allocation4] sm:$0xff]
    %v1125 = vld [vmem:[#allocation4 + $0x8] sm:$0xff]
    %v1126 = vld [vmem:[#allocation4 + $0x10] sm:$0xff]
    %v1127 = vld [vmem:[#allocation4 + $0x18] sm:$0xff]
    %v1128 = vld [vmem:[#allocation4 + $0x20] sm:$0xff]
    %v1129 = vld [vmem:[#allocation4 + $0x28] sm:$0xff]
    %v1130 = vld [vmem:[#allocation4 + $0x30] sm:$0xff]
    %v1131 = vld [vmem:[#allocation4 + $0x38] sm:$0xff]
    %v1140 = vunpack.c.l.b16 %v1124
    %v1141 = vunpack.c.h.b16 %v1124
    %v1142 = vunpack.c.l.b16 %v1125
    %v1143 = vunpack.c.h.b16 %v1125
    %v1144 = vunpack.c.l.b16 %v1126
    %v1145 = vunpack.c.h.b16 %v1126
    %v1146 = vunpack.c.l.b16 %v1127
    %v1147 = vunpack.c.h.b16 %v1127
    %v1148 = vunpack.c.l.b16 %v1128
    %v1149 = vunpack.c.h.b16 %v1128
    %v1150 = vunpack.c.l.b16 %v1129
    %v1151 = vunpack.c.h.b16 %v1129
    %v1152 = vunpack.c.l.b16 %v1130
    %v1153 = vunpack.c.h.b16 %v1130
    %v1154 = vunpack.c.l.b16 %v1131
    %v1155 = vunpack.c.h.b16 %v1131
    %v1156 = vpack.c.b16 %v1144, %v1140
    %v1157 = vpack.c.b16 %v1145, %v1141
    %v1158 = vpack.c.b16 %v1146, %v1142
    %v1159 = vpack.c.b16 %v1147, %v1143
    %v1160 = vpack.c.b16 %v1152, %v1148
    %v1161 = vpack.c.b16 %v1153, %v1149
    %v1162 = vpack.c.b16 %v1154, %v1150
    %v1163 = vpack.c.b16 %v1155, %v1151
    %v1173 = vsel %vm241, %v1123, 0
    %1175 = vmatprep.subr.bf16.mxu0 %v1157
    %1176 = vmatpush1.bf16.msra.mxu0 %v1156
    %1177 = vmatprep.subr.bf16.mxu0 %v1161
    %1178 = vmatpush1.bf16.msra.mxu0 %v1160
    %1179 = vmatprep.subr.bf16.mxu0 0
    %1180 = vmatpush1.bf16.msra.mxu0 0
    %1181 = vmatprep.subr.bf16.mxu0 0
    %1182 = vmatpush1.bf16.msra.mxu0 0
    %1183 = vmatprep.subr.bf16.mxu0 0
    %1184 = vmatpush1.bf16.msra.mxu0 0
    %1185 = vmatprep.subr.bf16.mxu0 0
    %1186 = vmatpush1.bf16.msra.mxu0 0
    %1187 = vmatprep.subr.bf16.mxu0 0
    %1188 = vmatpush1.bf16.msra.mxu0 0
    %1189 = vmatprep.subr.bf16.mxu0 0
    %1190 = vmatpush1.bf16.msra.mxu0 0
    %1191 = vmatprep.subr.bf16.mxu0 0
    %1192 = vmatpush1.bf16.msra.mxu0 0
    %1193 = vmatprep.subr.bf16.mxu0 0
    %1194 = vmatpush1.bf16.msra.mxu0 0
    %1195 = vmatprep.subr.bf16.mxu0 0
    %1196 = vmatpush1.bf16.msra.mxu0 0
    %1197 = vmatprep.subr.bf16.mxu0 0
    %1198 = vmatpush1.bf16.msra.mxu0 0
    %1199 = vmatprep.subr.bf16.mxu0 0
    %1200 = vmatpush1.bf16.msra.mxu0 0
    %1201 = vmatprep.subr.bf16.mxu0 0
    %1202 = vmatpush1.bf16.msra.mxu0 0
    %1203 = vmatprep.subr.bf16.mxu0 0
    %1204 = vmatpush1.bf16.msra.mxu0 0
    %1205 = vmatprep.subr.bf16.mxu0 0
    %1206 = vmatpush1.bf16.msra.mxu0 0
    %1207 = vmatprep.mubr.bf16.mxu0 0
    %1208 = vmatmul.mubr.bf16.gmra.mrb[0].mxu0 %v1173
    %v1209 = vpop.f32.mrb[0].mxu0
    %v1210 = vadd.f32 0.0, %v1209
    %v1211 = vpop.f32.mrb[0].mxu0
    %v1212 = vadd.f32 0.0, %v1211
    %v1213 = vpop.f32.mrb[0].mxu0
    %v1214 = vpop.f32.mrb[0].mxu0
    %1215 = vdwg.mxu0
    %1216 = vmatprep.subr.bf16.mxu0 %v1159
    %1217 = vmatpush1.bf16.msra.mxu0 %v1158
    %1218 = vmatprep.subr.bf16.mxu0 %v1163
    %1219 = vmatpush1.bf16.msra.mxu0 %v1162
    %1220 = vmatprep.subr.bf16.mxu0 0
    %1221 = vmatpush1.bf16.msra.mxu0 0
    %1222 = vmatprep.subr.bf16.mxu0 0
    %1223 = vmatpush1.bf16.msra.mxu0 0
    %1224 = vmatprep.subr.bf16.mxu0 0
    %1225 = vmatpush1.bf16.msra.mxu0 0
    %1226 = vmatprep.subr.bf16.mxu0 0
    %1227 = vmatpush1.bf16.msra.mxu0 0
    %1228 = vmatprep.subr.bf16.mxu0 0
    %1229 = vmatpush1.bf16.msra.mxu0 0
    %1230 = vmatprep.subr.bf16.mxu0 0
    %1231 = vmatpush1.bf16.msra.mxu0 0
    %1232 = vmatprep.subr.bf16.mxu0 0
    %1233 = vmatpush1.bf16.msra.mxu0 0
    %1234 = vmatprep.subr.bf16.mxu0 0
    %1235 = vmatpush1.bf16.msra.mxu0 0
    %1236 = vmatprep.subr.bf16.mxu0 0
    %1237 = vmatpush1.bf16.msra.mxu0 0
    %1238 = vmatprep.subr.bf16.mxu0 0
    %1239 = vmatpush1.bf16.msra.mxu0 0
    %1240 = vmatprep.subr.bf16.mxu0 0
    %1241 = vmatpush1.bf16.msra.mxu0 0
    %1242 = vmatprep.subr.bf16.mxu0 0
    %1243 = vmatpush1.bf16.msra.mxu0 0
    %1244 = vmatprep.subr.bf16.mxu0 0
    %1245 = vmatpush1.bf16.msra.mxu0 0
    %1246 = vmatprep.subr.bf16.mxu0 0
    %1247 = vmatpush1.bf16.msra.mxu0 0
    %1248 = vmatprep.mubr.bf16.mxu0 0
    %1249 = vmatmul.mubr.bf16.gmra.mrb[0].mxu0 %v1173
    %v1250 = vpop.f32.mrb[0].mxu0
    %v1251 = vadd.f32 0.0, %v1250
    %v1252 = vpop.f32.mrb[0].mxu0
    %v1253 = vadd.f32 0.0, %v1252
    %v1254 = vpop.f32.mrb[0].mxu0
    %v1255 = vpop.f32.mrb[0].mxu0
    %1256 = vdwg.mxu0
    %v1261 = vcombine.low %v1210, %v1212
    %v1262 = vcombine.low %v1251, %v1253
    %v1264 = vunpack.c.l.s4 1966171168
    %v1265 = vunpack.c.0.s8 %v1264
    %v1266 = vlaneseq
    %v1267 = vshrl.u32 %v1266, 7
    %v1268 = vsub.s32 %v1265, %v1267
    %v1269 = vrot.slane %v1261, %v1268
    %v1271 = vunpack.c.l.s4 1966171168
    %v1272 = vunpack.c.0.s8 %v1271
    %v1273 = vlaneseq
    %v1274 = vshrl.u32 %v1273, 7
    %v1275 = vsub.s32 %v1272, %v1274
    %v1276 = vrot.slane %v1262, %v1275
    %v1277 = vcombine.low %v1269, %v1276
    %v1279 = vunpack.c.l.s4 1966171168
    %v1280 = vunpack.c.0.s8 %v1279
    %v1281 = vlaneseq
    %v1282 = vshrl.u32 %v1281, 7
    %v1283 = vsub.s32 %v1280, %v1282
    %v1284 = vrot.slane %v1277, %v1283
    %v1286 = vadd.f32 %v1122, %v1284
    %v1287 = vxor.u32 %v1286, 2147483648
    %v1288 = vmul.f32 %v1287, 1.442695
    %v1289 = vpow.pop %v1288
    %v1290 = vadd.f32 %v1289, 1.0
    %v1291 = vrcp.pop %v1290
    %v1292 = vmul.f32 1.0, %v1291
    %v1294 = vrot.slane %v1286, 1
    %v1296 = vxor.u32 %v1294, 2147483648
    %v1297 = vmul.f32 %v1296, 1.442695
    %v1298 = vpow.pop %v1297
    %v1299 = vadd.f32 %v1298, 1.0
    %v1300 = vrcp.pop %v1299
    %v1301 = vmul.f32 1.0, %v1300
    %v1302 = vrot.slane %v1286, 2
    %v1304 = vtanh.pop %v1302
    %v1305 = vrot.slane %v1286, 3
    %v1307 = vxor.u32 %v1305, 2147483648
    %v1308 = vmul.f32 %v1307, 1.442695
    %v1309 = vpow.pop %v1308
    %v1310 = vadd.f32 %v1309, 1.0
    %v1311 = vrcp.pop %v1310
    %v1312 = vmul.f32 1.0, %v1311
    %v1313 = vmul.f32 %v1301, %v1117
    %v1314 = vmul.f32 %v1292, %v1304
    %v1315 = vadd.f32 %v1313, %v1314
    %v1316 = vtanh.pop %v1315
    %v1317 = vmul.f32 %v1312, %v1316
    %1318 = vst [vmem:[#allocation3 + $0x4] sm:$0x1] %v1317
    %s1319 = scalar_lea.vmem [#allocation2], 5
    %v1320 = vld [vmem:[%s1319] ss:$8 sm:$0xf]
    %v1321 = vpack.c.bf16 %v1317, %v1317
    %v1322 = vld [vmem:[#allocation4] sm:$0xff]
    %v1323 = vld [vmem:[#allocation4 + $0x8] sm:$0xff]
    %v1324 = vld [vmem:[#allocation4 + $0x10] sm:$0xff]
    %v1325 = vld [vmem:[#allocation4 + $0x18] sm:$0xff]
    %v1326 = vld [vmem:[#allocation4 + $0x20] sm:$0xff]
    %v1327 = vld [vmem:[#allocation4 + $0x28] sm:$0xff]
    %v1328 = vld [vmem:[#allocation4 + $0x30] sm:$0xff]
    %v1329 = vld [vmem:[#allocation4 + $0x38] sm:$0xff]
    %v1338 = vunpack.c.l.b16 %v1322
    %v1339 = vunpack.c.h.b16 %v1322
    %v1340 = vunpack.c.l.b16 %v1323
    %v1341 = vunpack.c.h.b16 %v1323
    %v1342 = vunpack.c.l.b16 %v1324
    %v1343 = vunpack.c.h.b16 %v1324
    %v1344 = vunpack.c.l.b16 %v1325
    %v1345 = vunpack.c.h.b16 %v1325
    %v1346 = vunpack.c.l.b16 %v1326
    %v1347 = vunpack.c.h.b16 %v1326
    %v1348 = vunpack.c.l.b16 %v1327
    %v1349 = vunpack.c.h.b16 %v1327
    %v1350 = vunpack.c.l.b16 %v1328
    %v1351 = vunpack.c.h.b16 %v1328
    %v1352 = vunpack.c.l.b16 %v1329
    %v1353 = vunpack.c.h.b16 %v1329
    %v1354 = vpack.c.b16 %v1342, %v1338
    %v1355 = vpack.c.b16 %v1343, %v1339
    %v1356 = vpack.c.b16 %v1344, %v1340
    %v1357 = vpack.c.b16 %v1345, %v1341
    %v1358 = vpack.c.b16 %v1350, %v1346
    %v1359 = vpack.c.b16 %v1351, %v1347
    %v1360 = vpack.c.b16 %v1352, %v1348
    %v1361 = vpack.c.b16 %v1353, %v1349
    %v1371 = vsel %vm241, %v1321, 0
    %1373 = vmatprep.subr.bf16.mxu0 %v1355
    %1374 = vmatpush1.bf16.msra.mxu0 %v1354
    %1375 = vmatprep.subr.bf16.mxu0 %v1359
    %1376 = vmatpush1.bf16.msra.mxu0 %v1358
    %1377 = vmatprep.subr.bf16.mxu0 0
    %1378 = vmatpush1.bf16.msra.mxu0 0
    %1379 = vmatprep.subr.bf16.mxu0 0
    %1380 = vmatpush1.bf16.msra.mxu0 0
    %1381 = vmatprep.subr.bf16.mxu0 0
    %1382 = vmatpush1.bf16.msra.mxu0 0
    %1383 = vmatprep.subr.bf16.mxu0 0
    %1384 = vmatpush1.bf16.msra.mxu0 0
    %1385 = vmatprep.subr.bf16.mxu0 0
    %1386 = vmatpush1.bf16.msra.mxu0 0
    %1387 = vmatprep.subr.bf16.mxu0 0
    %1388 = vmatpush1.bf16.msra.mxu0 0
    %1389 = vmatprep.subr.bf16.mxu0 0
    %1390 = vmatpush1.bf16.msra.mxu0 0
    %1391 = vmatprep.subr.bf16.mxu0 0
    %1392 = vmatpush1.bf16.msra.mxu0 0
    %1393 = vmatprep.subr.bf16.mxu0 0
    %1394 = vmatpush1.bf16.msra.mxu0 0
    %1395 = vmatprep.subr.bf16.mxu0 0
    %1396 = vmatpush1.bf16.msra.mxu0 0
    %1397 = vmatprep.subr.bf16.mxu0 0
    %1398 = vmatpush1.bf16.msra.mxu0 0
    %1399 = vmatprep.subr.bf16.mxu0 0
    %1400 = vmatpush1.bf16.msra.mxu0 0
    %1401 = vmatprep.subr.bf16.mxu0 0
    %1402 = vmatpush1.bf16.msra.mxu0 0
    %1403 = vmatprep.subr.bf16.mxu0 0
    %1404 = vmatpush1.bf16.msra.mxu0 0
    %1405 = vmatprep.mubr.bf16.mxu0 0
    %1406 = vmatmul.mubr.bf16.gmra.mrb[0].mxu0 %v1371
    %v1407 = vpop.f32.mrb[0].mxu0
    %v1408 = vadd.f32 0.0, %v1407
    %v1409 = vpop.f32.mrb[0].mxu0
    %v1410 = vadd.f32 0.0, %v1409
    %v1411 = vpop.f32.mrb[0].mxu0
    %v1412 = vpop.f32.mrb[0].mxu0
    %1413 = vdwg.mxu0
    %1414 = vmatprep.subr.bf16.mxu0 %v1357
    %1415 = vmatpush1.bf16.msra.mxu0 %v1356
    %1416 = vmatprep.subr.bf16.mxu0 %v1361
    %1417 = vmatpush1.bf16.msra.mxu0 %v1360
    %1418 = vmatprep.subr.bf16.mxu0 0
    %1419 = vmatpush1.bf16.msra.mxu0 0
    %1420 = vmatprep.subr.bf16.mxu0 0
    %1421 = vmatpush1.bf16.msra.mxu0 0
    %1422 = vmatprep.subr.bf16.mxu0 0
    %1423 = vmatpush1.bf16.msra.mxu0 0
    %1424 = vmatprep.subr.bf16.mxu0 0
    %1425 = vmatpush1.bf16.msra.mxu0 0
    %1426 = vmatprep.subr.bf16.mxu0 0
    %1427 = vmatpush1.bf16.msra.mxu0 0
    %1428 = vmatprep.subr.bf16.mxu0 0
    %1429 = vmatpush1.bf16.msra.mxu0 0
    %1430 = vmatprep.subr.bf16.mxu0 0
    %1431 = vmatpush1.bf16.msra.mxu0 0
    %1432 = vmatprep.subr.bf16.mxu0 0
    %1433 = vmatpush1.bf16.msra.mxu0 0
    %1434 = vmatprep.subr.bf16.mxu0 0
    %1435 = vmatpush1.bf16.msra.mxu0 0
    %1436 = vmatprep.subr.bf16.mxu0 0
    %1437 = vmatpush1.bf16.msra.mxu0 0
    %1438 = vmatprep.subr.bf16.mxu0 0
    %1439 = vmatpush1.bf16.msra.mxu0 0
    %1440 = vmatprep.subr.bf16.mxu0 0
    %1441 = vmatpush1.bf16.msra.mxu0 0
    %1442 = vmatprep.subr.bf16.mxu0 0
    %1443 = vmatpush1.bf16.msra.mxu0 0
    %1444 = vmatprep.subr.bf16.mxu0 0
    %1445 = vmatpush1.bf16.msra.mxu0 0
    %1446 = vmatprep.mubr.bf16.mxu0 0
    %1447 = vmatmul.mubr.bf16.gmra.mrb[0].mxu0 %v1371
    %v1448 = vpop.f32.mrb[0].mxu0
    %v1449 = vadd.f32 0.0, %v1448
    %v1450 = vpop.f32.mrb[0].mxu0
    %v1451 = vadd.f32 0.0, %v1450
    %v1452 = vpop.f32.mrb[0].mxu0
    %v1453 = vpop.f32.mrb[0].mxu0
    %1454 = vdwg.mxu0
    %v1459 = vcombine.low %v1408, %v1410
    %v1460 = vcombine.low %v1449, %v1451
    %v1462 = vunpack.c.l.s4 1966171168
    %v1463 = vunpack.c.0.s8 %v1462
    %v1464 = vlaneseq
    %v1465 = vshrl.u32 %v1464, 7
    %v1466 = vsub.s32 %v1463, %v1465
    %v1467 = vrot.slane %v1459, %v1466
    %v1469 = vunpack.c.l.s4 1966171168
    %v1470 = vunpack.c.0.s8 %v1469
    %v1471 = vlaneseq
    %v1472 = vshrl.u32 %v1471, 7
    %v1473 = vsub.s32 %v1470, %v1472
    %v1474 = vrot.slane %v1460, %v1473
    %v1475 = vcombine.low %v1467, %v1474
    %v1477 = vunpack.c.l.s4 1966171168
    %v1478 = vunpack.c.0.s8 %v1477
    %v1479 = vlaneseq
    %v1480 = vshrl.u32 %v1479, 7
    %v1481 = vsub.s32 %v1478, %v1480
    %v1482 = vrot.slane %v1475, %v1481
    %v1484 = vadd.f32 %v1320, %v1482
    %v1485 = vxor.u32 %v1484, 2147483648
    %v1486 = vmul.f32 %v1485, 1.442695
    %v1487 = vpow.pop %v1486
    %v1488 = vadd.f32 %v1487, 1.0
    %v1489 = vrcp.pop %v1488
    %v1490 = vmul.f32 1.0, %v1489
    %v1492 = vrot.slane %v1484, 1
    %v1494 = vxor.u32 %v1492, 2147483648
    %v1495 = vmul.f32 %v1494, 1.442695
    %v1496 = vpow.pop %v1495
    %v1497 = vadd.f32 %v1496, 1.0
    %v1498 = vrcp.pop %v1497
    %v1499 = vmul.f32 1.0, %v1498
    %v1500 = vrot.slane %v1484, 2
    %v1502 = vtanh.pop %v1500
    %v1503 = vrot.slane %v1484, 3
    %v1505 = vxor.u32 %v1503, 2147483648
    %v1506 = vmul.f32 %v1505, 1.442695
    %v1507 = vpow.pop %v1506
    %v1508 = vadd.f32 %v1507, 1.0
    %v1509 = vrcp.pop %v1508
    %v1510 = vmul.f32 1.0, %v1509
    %v1511 = vmul.f32 %v1499, %v1315
    %v1512 = vmul.f32 %v1490, %v1502
    %v1513 = vadd.f32 %v1511, %v1512
    %v1514 = vtanh.pop %v1513
    %v1515 = vmul.f32 %v1510, %v1514
    %1516 = vst [vmem:[#allocation3 + $0x5] sm:$0x1] %v1515
    %s1517 = scalar_lea.vmem [#allocation2], 6
    %v1518 = vld [vmem:[%s1517] ss:$8 sm:$0xf]
    %v1519 = vpack.c.bf16 %v1515, %v1515
    %v1520 = vld [vmem:[#allocation4] sm:$0xff]
    %v1521 = vld [vmem:[#allocation4 + $0x8] sm:$0xff]
    %v1522 = vld [vmem:[#allocation4 + $0x10] sm:$0xff]
    %v1523 = vld [vmem:[#allocation4 + $0x18] sm:$0xff]
    %v1524 = vld [vmem:[#allocation4 + $0x20] sm:$0xff]
    %v1525 = vld [vmem:[#allocation4 + $0x28] sm:$0xff]
    %v1526 = vld [vmem:[#allocation4 + $0x30] sm:$0xff]
    %v1527 = vld [vmem:[#allocation4 + $0x38] sm:$0xff]
    %v1536 = vunpack.c.l.b16 %v1520
    %v1537 = vunpack.c.h.b16 %v1520
    %v1538 = vunpack.c.l.b16 %v1521
    %v1539 = vunpack.c.h.b16 %v1521
    %v1540 = vunpack.c.l.b16 %v1522
    %v1541 = vunpack.c.h.b16 %v1522
    %v1542 = vunpack.c.l.b16 %v1523
    %v1543 = vunpack.c.h.b16 %v1523
    %v1544 = vunpack.c.l.b16 %v1524
    %v1545 = vunpack.c.h.b16 %v1524
    %v1546 = vunpack.c.l.b16 %v1525
    %v1547 = vunpack.c.h.b16 %v1525
    %v1548 = vunpack.c.l.b16 %v1526
    %v1549 = vunpack.c.h.b16 %v1526
    %v1550 = vunpack.c.l.b16 %v1527
    %v1551 = vunpack.c.h.b16 %v1527
    %v1552 = vpack.c.b16 %v1540, %v1536
    %v1553 = vpack.c.b16 %v1541, %v1537
    %v1554 = vpack.c.b16 %v1542, %v1538
    %v1555 = vpack.c.b16 %v1543, %v1539
    %v1556 = vpack.c.b16 %v1548, %v1544
    %v1557 = vpack.c.b16 %v1549, %v1545
    %v1558 = vpack.c.b16 %v1550, %v1546
    %v1559 = vpack.c.b16 %v1551, %v1547
    %v1569 = vsel %vm241, %v1519, 0
    %1571 = vmatprep.subr.bf16.mxu0 %v1553
    %1572 = vmatpush1.bf16.msra.mxu0 %v1552
    %1573 = vmatprep.subr.bf16.mxu0 %v1557
    %1574 = vmatpush1.bf16.msra.mxu0 %v1556
    %1575 = vmatprep.subr.bf16.mxu0 0
    %1576 = vmatpush1.bf16.msra.mxu0 0
    %1577 = vmatprep.subr.bf16.mxu0 0
    %1578 = vmatpush1.bf16.msra.mxu0 0
    %1579 = vmatprep.subr.bf16.mxu0 0
    %1580 = vmatpush1.bf16.msra.mxu0 0
    %1581 = vmatprep.subr.bf16.mxu0 0
    %1582 = vmatpush1.bf16.msra.mxu0 0
    %1583 = vmatprep.subr.bf16.mxu0 0
    %1584 = vmatpush1.bf16.msra.mxu0 0
    %1585 = vmatprep.subr.bf16.mxu0 0
    %1586 = vmatpush1.bf16.msra.mxu0 0
    %1587 = vmatprep.subr.bf16.mxu0 0
    %1588 = vmatpush1.bf16.msra.mxu0 0
    %1589 = vmatprep.subr.bf16.mxu0 0
    %1590 = vmatpush1.bf16.msra.mxu0 0
    %1591 = vmatprep.subr.bf16.mxu0 0
    %1592 = vmatpush1.bf16.msra.mxu0 0
    %1593 = vmatprep.subr.bf16.mxu0 0
    %1594 = vmatpush1.bf16.msra.mxu0 0
    %1595 = vmatprep.subr.bf16.mxu0 0
    %1596 = vmatpush1.bf16.msra.mxu0 0
    %1597 = vmatprep.subr.bf16.mxu0 0
    %1598 = vmatpush1.bf16.msra.mxu0 0
    %1599 = vmatprep.subr.bf16.mxu0 0
    %1600 = vmatpush1.bf16.msra.mxu0 0
    %1601 = vmatprep.subr.bf16.mxu0 0
    %1602 = vmatpush1.bf16.msra.mxu0 0
    %1603 = vmatprep.mubr.bf16.mxu0 0
    %1604 = vmatmul.mubr.bf16.gmra.mrb[0].mxu0 %v1569
    %v1605 = vpop.f32.mrb[0].mxu0
    %v1606 = vadd.f32 0.0, %v1605
    %v1607 = vpop.f32.mrb[0].mxu0
    %v1608 = vadd.f32 0.0, %v1607
    %v1609 = vpop.f32.mrb[0].mxu0
    %v1610 = vpop.f32.mrb[0].mxu0
    %1611 = vdwg.mxu0
    %1612 = vmatprep.subr.bf16.mxu0 %v1555
    %1613 = vmatpush1.bf16.msra.mxu0 %v1554
    %1614 = vmatprep.subr.bf16.mxu0 %v1559
    %1615 = vmatpush1.bf16.msra.mxu0 %v1558
    %1616 = vmatprep.subr.bf16.mxu0 0
    %1617 = vmatpush1.bf16.msra.mxu0 0
    %1618 = vmatprep.subr.bf16.mxu0 0
    %1619 = vmatpush1.bf16.msra.mxu0 0
    %1620 = vmatprep.subr.bf16.mxu0 0
    %1621 = vmatpush1.bf16.msra.mxu0 0
    %1622 = vmatprep.subr.bf16.mxu0 0
    %1623 = vmatpush1.bf16.msra.mxu0 0
    %1624 = vmatprep.subr.bf16.mxu0 0
    %1625 = vmatpush1.bf16.msra.mxu0 0
    %1626 = vmatprep.subr.bf16.mxu0 0
    %1627 = vmatpush1.bf16.msra.mxu0 0
    %1628 = vmatprep.subr.bf16.mxu0 0
    %1629 = vmatpush1.bf16.msra.mxu0 0
    %1630 = vmatprep.subr.bf16.mxu0 0
    %1631 = vmatpush1.bf16.msra.mxu0 0
    %1632 = vmatprep.subr.bf16.mxu0 0
    %1633 = vmatpush1.bf16.msra.mxu0 0
    %1634 = vmatprep.subr.bf16.mxu0 0
    %1635 = vmatpush1.bf16.msra.mxu0 0
    %1636 = vmatprep.subr.bf16.mxu0 0
    %1637 = vmatpush1.bf16.msra.mxu0 0
    %1638 = vmatprep.subr.bf16.mxu0 0
    %1639 = vmatpush1.bf16.msra.mxu0 0
    %1640 = vmatprep.subr.bf16.mxu0 0
    %1641 = vmatpush1.bf16.msra.mxu0 0
    %1642 = vmatprep.subr.bf16.mxu0 0
    %1643 = vmatpush1.bf16.msra.mxu0 0
    %1644 = vmatprep.mubr.bf16.mxu0 0
    %1645 = vmatmul.mubr.bf16.gmra.mrb[0].mxu0 %v1569
    %v1646 = vpop.f32.mrb[0].mxu0
    %v1647 = vadd.f32 0.0, %v1646
    %v1648 = vpop.f32.mrb[0].mxu0
    %v1649 = vadd.f32 0.0, %v1648
    %v1650 = vpop.f32.mrb[0].mxu0
    %v1651 = vpop.f32.mrb[0].mxu0
    %1652 = vdwg.mxu0
    %v1657 = vcombine.low %v1606, %v1608
    %v1658 = vcombine.low %v1647, %v1649
    %v1660 = vunpack.c.l.s4 1966171168
    %v1661 = vunpack.c.0.s8 %v1660
    %v1662 = vlaneseq
    %v1663 = vshrl.u32 %v1662, 7
    %v1664 = vsub.s32 %v1661, %v1663
    %v1665 = vrot.slane %v1657, %v1664
    %v1667 = vunpack.c.l.s4 1966171168
    %v1668 = vunpack.c.0.s8 %v1667
    %v1669 = vlaneseq
    %v1670 = vshrl.u32 %v1669, 7
    %v1671 = vsub.s32 %v1668, %v1670
    %v1672 = vrot.slane %v1658, %v1671
    %v1673 = vcombine.low %v1665, %v1672
    %v1675 = vunpack.c.l.s4 1966171168
    %v1676 = vunpack.c.0.s8 %v1675
    %v1677 = vlaneseq
    %v1678 = vshrl.u32 %v1677, 7
    %v1679 = vsub.s32 %v1676, %v1678
    %v1680 = vrot.slane %v1673, %v1679
    %v1682 = vadd.f32 %v1518, %v1680
    %v1683 = vxor.u32 %v1682, 2147483648
    %v1684 = vmul.f32 %v1683, 1.442695
    %v1685 = vpow.pop %v1684
    %v1686 = vadd.f32 %v1685, 1.0
    %v1687 = vrcp.pop %v1686
    %v1688 = vmul.f32 1.0, %v1687
    %v1690 = vrot.slane %v1682, 1
    %v1692 = vxor.u32 %v1690, 2147483648
    %v1693 = vmul.f32 %v1692, 1.442695
    %v1694 = vpow.pop %v1693
    %v1695 = vadd.f32 %v1694, 1.0
    %v1696 = vrcp.pop %v1695
    %v1697 = vmul.f32 1.0, %v1696
    %v1698 = vrot.slane %v1682, 2
    %v1700 = vtanh.pop %v1698
    %v1701 = vrot.slane %v1682, 3
    %v1703 = vxor.u32 %v1701, 2147483648
    %v1704 = vmul.f32 %v1703, 1.442695
    %v1705 = vpow.pop %v1704
    %v1706 = vadd.f32 %v1705, 1.0
    %v1707 = vrcp.pop %v1706
    %v1708 = vmul.f32 1.0, %v1707
    %v1709 = vmul.f32 %v1697, %v1513
    %v1710 = vmul.f32 %v1688, %v1700
    %v1711 = vadd.f32 %v1709, %v1710
    %v1712 = vtanh.pop %v1711
    %v1713 = vmul.f32 %v1708, %v1712
    %1714 = vst [vmem:[#allocation3 + $0x6] sm:$0x1] %v1713
    %s1715 = scalar_lea.vmem [#allocation2], 7
    %v1716 = vld [vmem:[%s1715] ss:$8 sm:$0xf]
    %v1717 = vpack.c.bf16 %v1713, %v1713
    %v1718 = vld [vmem:[#allocation4] sm:$0xff]
    %v1719 = vld [vmem:[#allocation4 + $0x8] sm:$0xff]
    %v1720 = vld [vmem:[#allocation4 + $0x10] sm:$0xff]
    %v1721 = vld [vmem:[#allocation4 + $0x18] sm:$0xff]
    %v1722 = vld [vmem:[#allocation4 + $0x20] sm:$0xff]
    %v1723 = vld [vmem:[#allocation4 + $0x28] sm:$0xff]
    %v1724 = vld [vmem:[#allocation4 + $0x30] sm:$0xff]
    %v1725 = vld [vmem:[#allocation4 + $0x38] sm:$0xff]
    %v1734 = vunpack.c.l.b16 %v1718
    %v1735 = vunpack.c.h.b16 %v1718
    %v1736 = vunpack.c.l.b16 %v1719
    %v1737 = vunpack.c.h.b16 %v1719
    %v1738 = vunpack.c.l.b16 %v1720
    %v1739 = vunpack.c.h.b16 %v1720
    %v1740 = vunpack.c.l.b16 %v1721
    %v1741 = vunpack.c.h.b16 %v1721
    %v1742 = vunpack.c.l.b16 %v1722
    %v1743 = vunpack.c.h.b16 %v1722
    %v1744 = vunpack.c.l.b16 %v1723
    %v1745 = vunpack.c.h.b16 %v1723
    %v1746 = vunpack.c.l.b16 %v1724
    %v1747 = vunpack.c.h.b16 %v1724
    %v1748 = vunpack.c.l.b16 %v1725
    %v1749 = vunpack.c.h.b16 %v1725
    %v1750 = vpack.c.b16 %v1738, %v1734
    %v1751 = vpack.c.b16 %v1739, %v1735
    %v1752 = vpack.c.b16 %v1740, %v1736
    %v1753 = vpack.c.b16 %v1741, %v1737
    %v1754 = vpack.c.b16 %v1746, %v1742
    %v1755 = vpack.c.b16 %v1747, %v1743
    %v1756 = vpack.c.b16 %v1748, %v1744
    %v1757 = vpack.c.b16 %v1749, %v1745
    %v1767 = vsel %vm241, %v1717, 0
    %1769 = vmatprep.subr.bf16.mxu0 %v1751
    %1770 = vmatpush1.bf16.msra.mxu0 %v1750
    %1771 = vmatprep.subr.bf16.mxu0 %v1755
    %1772 = vmatpush1.bf16.msra.mxu0 %v1754
    %1773 = vmatprep.subr.bf16.mxu0 0
    %1774 = vmatpush1.bf16.msra.mxu0 0
    %1775 = vmatprep.subr.bf16.mxu0 0
    %1776 = vmatpush1.bf16.msra.mxu0 0
    %1777 = vmatprep.subr.bf16.mxu0 0
    %1778 = vmatpush1.bf16.msra.mxu0 0
    %1779 = vmatprep.subr.bf16.mxu0 0
    %1780 = vmatpush1.bf16.msra.mxu0 0
    %1781 = vmatprep.subr.bf16.mxu0 0
    %1782 = vmatpush1.bf16.msra.mxu0 0
    %1783 = vmatprep.subr.bf16.mxu0 0
    %1784 = vmatpush1.bf16.msra.mxu0 0
    %1785 = vmatprep.subr.bf16.mxu0 0
    %1786 = vmatpush1.bf16.msra.mxu0 0
    %1787 = vmatprep.subr.bf16.mxu0 0
    %1788 = vmatpush1.bf16.msra.mxu0 0
    %1789 = vmatprep.subr.bf16.mxu0 0
    %1790 = vmatpush1.bf16.msra.mxu0 0
    %1791 = vmatprep.subr.bf16.mxu0 0
    %1792 = vmatpush1.bf16.msra.mxu0 0
    %1793 = vmatprep.subr.bf16.mxu0 0
    %1794 = vmatpush1.bf16.msra.mxu0 0
    %1795 = vmatprep.subr.bf16.mxu0 0
    %1796 = vmatpush1.bf16.msra.mxu0 0
    %1797 = vmatprep.subr.bf16.mxu0 0
    %1798 = vmatpush1.bf16.msra.mxu0 0
    %1799 = vmatprep.subr.bf16.mxu0 0
    %1800 = vmatpush1.bf16.msra.mxu0 0
    %1801 = vmatprep.mubr.bf16.mxu0 0
    %1802 = vmatmul.mubr.bf16.gmra.mrb[0].mxu0 %v1767
    %v1803 = vpop.f32.mrb[0].mxu0
    %v1804 = vadd.f32 0.0, %v1803
    %v1805 = vpop.f32.mrb[0].mxu0
    %v1806 = vadd.f32 0.0, %v1805
    %v1807 = vpop.f32.mrb[0].mxu0
    %v1808 = vpop.f32.mrb[0].mxu0
    %1809 = vdwg.mxu0
    %1810 = vmatprep.subr.bf16.mxu0 %v1753
    %1811 = vmatpush1.bf16.msra.mxu0 %v1752
    %1812 = vmatprep.subr.bf16.mxu0 %v1757
    %1813 = vmatpush1.bf16.msra.mxu0 %v1756
    %1814 = vmatprep.subr.bf16.mxu0 0
    %1815 = vmatpush1.bf16.msra.mxu0 0
    %1816 = vmatprep.subr.bf16.mxu0 0
    %1817 = vmatpush1.bf16.msra.mxu0 0
    %1818 = vmatprep.subr.bf16.mxu0 0
    %1819 = vmatpush1.bf16.msra.mxu0 0
    %1820 = vmatprep.subr.bf16.mxu0 0
    %1821 = vmatpush1.bf16.msra.mxu0 0
    %1822 = vmatprep.subr.bf16.mxu0 0
    %1823 = vmatpush1.bf16.msra.mxu0 0
    %1824 = vmatprep.subr.bf16.mxu0 0
    %1825 = vmatpush1.bf16.msra.mxu0 0
    %1826 = vmatprep.subr.bf16.mxu0 0
    %1827 = vmatpush1.bf16.msra.mxu0 0
    %1828 = vmatprep.subr.bf16.mxu0 0
    %1829 = vmatpush1.bf16.msra.mxu0 0
    %1830 = vmatprep.subr.bf16.mxu0 0
    %1831 = vmatpush1.bf16.msra.mxu0 0
    %1832 = vmatprep.subr.bf16.mxu0 0
    %1833 = vmatpush1.bf16.msra.mxu0 0
    %1834 = vmatprep.subr.bf16.mxu0 0
    %1835 = vmatpush1.bf16.msra.mxu0 0
    %1836 = vmatprep.subr.bf16.mxu0 0
    %1837 = vmatpush1.bf16.msra.mxu0 0
    %1838 = vmatprep.subr.bf16.mxu0 0
    %1839 = vmatpush1.bf16.msra.mxu0 0
    %1840 = vmatprep.subr.bf16.mxu0 0
    %1841 = vmatpush1.bf16.msra.mxu0 0
    %1842 = vmatprep.mubr.bf16.mxu0 0
    %1843 = vmatmul.mubr.bf16.gmra.mrb[0].mxu0 %v1767
    %v1844 = vpop.f32.mrb[0].mxu0
    %v1845 = vadd.f32 0.0, %v1844
    %v1846 = vpop.f32.mrb[0].mxu0
    %v1847 = vadd.f32 0.0, %v1846
    %v1848 = vpop.f32.mrb[0].mxu0
    %v1849 = vpop.f32.mrb[0].mxu0
    %1850 = vdwg.mxu0
    %v1855 = vcombine.low %v1804, %v1806
    %v1856 = vcombine.low %v1845, %v1847
    %v1858 = vunpack.c.l.s4 1966171168
    %v1859 = vunpack.c.0.s8 %v1858
    %v1860 = vlaneseq
    %v1861 = vshrl.u32 %v1860, 7
    %v1862 = vsub.s32 %v1859, %v1861
    %v1863 = vrot.slane %v1855, %v1862
    %v1865 = vunpack.c.l.s4 1966171168
    %v1866 = vunpack.c.0.s8 %v1865
    %v1867 = vlaneseq
    %v1868 = vshrl.u32 %v1867, 7
    %v1869 = vsub.s32 %v1866, %v1868
    %v1870 = vrot.slane %v1856, %v1869
    %v1871 = vcombine.low %v1863, %v1870
    %v1873 = vunpack.c.l.s4 1966171168
    %v1874 = vunpack.c.0.s8 %v1873
    %v1875 = vlaneseq
    %v1876 = vshrl.u32 %v1875, 7
    %v1877 = vsub.s32 %v1874, %v1876
    %v1878 = vrot.slane %v1871, %v1877
    %v1880 = vadd.f32 %v1716, %v1878
    %v1881 = vxor.u32 %v1880, 2147483648
    %v1882 = vmul.f32 %v1881, 1.442695
    %v1883 = vpow.pop %v1882
    %v1884 = vadd.f32 %v1883, 1.0
    %v1885 = vrcp.pop %v1884
    %v1886 = vmul.f32 1.0, %v1885
    %v1888 = vrot.slane %v1880, 1
    %v1890 = vxor.u32 %v1888, 2147483648
    %v1891 = vmul.f32 %v1890, 1.442695
    %v1892 = vpow.pop %v1891
    %v1893 = vadd.f32 %v1892, 1.0
    %v1894 = vrcp.pop %v1893
    %v1895 = vmul.f32 1.0, %v1894
    %v1896 = vrot.slane %v1880, 2
    %v1898 = vtanh.pop %v1896
    %v1899 = vrot.slane %v1880, 3
    %v1901 = vxor.u32 %v1899, 2147483648
    %v1902 = vmul.f32 %v1901, 1.442695
    %v1903 = vpow.pop %v1902
    %v1904 = vadd.f32 %v1903, 1.0
    %v1905 = vrcp.pop %v1904
    %v1906 = vmul.f32 1.0, %v1905
    %v1907 = vmul.f32 %v1895, %v1711
    %v1908 = vmul.f32 %v1886, %v1898
    %v1909 = vadd.f32 %v1907, %v1908
    %v1910 = vtanh.pop %v1909
    %v1911 = vmul.f32 %v1906, %v1910
    %1912 = vst [vmem:[#allocation3 + $0x7] sm:$0x1] %v1911
    %v1913 = vld [vmem:[#allocation3] sm:$0xff]
    %v1914 = vpack.c.bf16 %v1913, %v1913
    %v1915 = vld [vmem:[#allocation7] sm:$0xf]
    %v1916 = vld [vmem:[#allocation7 + $0x4] sm:$0xf]
    %v1917 = vld [vmem:[#allocation7 + $0x8] sm:$0xf]
    %v1918 = vld [vmem:[#allocation7 + $0xc] sm:$0xf]
    %v1919 = vld [vmem:[#allocation7 + $0x10] sm:$0xf]
    %v1920 = vld [vmem:[#allocation7 + $0x14] sm:$0xf]
    %v1921 = vld [vmem:[#allocation7 + $0x18] sm:$0xf]
    %v1922 = vld [vmem:[#allocation7 + $0x1c] sm:$0xf]
    %v1923 = vld [vmem:[#allocation7 + $0x20] sm:$0xf]
    %v1924 = vld [vmem:[#allocation7 + $0x24] sm:$0xf]
    %v1925 = vld [vmem:[#allocation7 + $0x28] sm:$0xf]
    %v1926 = vld [vmem:[#allocation7 + $0x2c] sm:$0xf]
    %v1927 = vld [vmem:[#allocation7 + $0x30] sm:$0xf]
    %v1928 = vld [vmem:[#allocation7 + $0x34] sm:$0xf]
    %v1929 = vld [vmem:[#allocation7 + $0x38] sm:$0xf]
    %v1930 = vld [vmem:[#allocation7 + $0x3c] sm:$0xf]
    %v1931 = vld [vmem:[%s6] sm:$0x1]
    %v1933 = vlaneseq
    %v1934 = vshrl.u32 %v1933, 7
    %v1935 = vsub.s32 0, %v1934
    %v1936 = vrot.slane %v1931, %v1935
    %v1954 = vunpack.c.l.b16 %v1915
    %v1955 = vunpack.c.l.b16 %v1916
    %v1956 = vunpack.c.l.b16 %v1917
    %v1957 = vunpack.c.l.b16 %v1918
    %v1958 = vunpack.c.l.b16 %v1919
    %v1959 = vunpack.c.l.b16 %v1920
    %v1960 = vunpack.c.l.b16 %v1921
    %v1961 = vunpack.c.l.b16 %v1922
    %v1962 = vunpack.c.l.b16 %v1923
    %v1963 = vunpack.c.l.b16 %v1924
    %v1964 = vunpack.c.l.b16 %v1925
    %v1965 = vunpack.c.l.b16 %v1926
    %v1966 = vunpack.c.l.b16 %v1927
    %v1967 = vunpack.c.l.b16 %v1928
    %v1968 = vunpack.c.l.b16 %v1929
    %v1969 = vunpack.c.l.b16 %v1930
    %v1970 = vpack.c.b16 %v1955, %v1954
    %v1971 = vpack.c.b16 %v1957, %v1956
    %v1972 = vpack.c.b16 %v1959, %v1958
    %v1973 = vpack.c.b16 %v1961, %v1960
    %v1974 = vpack.c.b16 %v1963, %v1962
    %v1975 = vpack.c.b16 %v1965, %v1964
    %v1976 = vpack.c.b16 %v1967, %v1966
    %v1977 = vpack.c.b16 %v1969, %v1968
    %1986 = vmatprep.subr.bf16.mxu0 0
    %1987 = vmatpush1.bf16.msra.mxu0 %v1970
    %1988 = vmatprep.subr.bf16.mxu0 0
    %1989 = vmatpush1.bf16.msra.mxu0 %v1971
    %1990 = vmatprep.subr.bf16.mxu0 0
    %1991 = vmatpush1.bf16.msra.mxu0 %v1972
    %1992 = vmatprep.subr.bf16.mxu0 0
    %1993 = vmatpush1.bf16.msra.mxu0 %v1973
    %1994 = vmatprep.subr.bf16.mxu0 0
    %1995 = vmatpush1.bf16.msra.mxu0 %v1974
    %1996 = vmatprep.subr.bf16.mxu0 0
    %1997 = vmatpush1.bf16.msra.mxu0 %v1975
    %1998 = vmatprep.subr.bf16.mxu0 0
    %1999 = vmatpush1.bf16.msra.mxu0 %v1976
    %2000 = vmatprep.subr.bf16.mxu0 0
    %2001 = vmatpush1.bf16.msra.mxu0 %v1977
    %2002 = vmatprep.subr.bf16.mxu0 0
    %2003 = vmatpush1.bf16.msra.mxu0 0
    %2004 = vmatprep.subr.bf16.mxu0 0
    %2005 = vmatpush1.bf16.msra.mxu0 0
    %2006 = vmatprep.subr.bf16.mxu0 0
    %2007 = vmatpush1.bf16.msra.mxu0 0
    %2008 = vmatprep.subr.bf16.mxu0 0
    %2009 = vmatpush1.bf16.msra.mxu0 0
    %2010 = vmatprep.subr.bf16.mxu0 0
    %2011 = vmatpush1.bf16.msra.mxu0 0
    %2012 = vmatprep.subr.bf16.mxu0 0
    %2013 = vmatpush1.bf16.msra.mxu0 0
    %2014 = vmatprep.subr.bf16.mxu0 0
    %2015 = vmatpush1.bf16.msra.mxu0 0
    %2016 = vmatprep.subr.bf16.mxu0 0
    %2017 = vmatpush1.bf16.msra.mxu0 0
    %2018 = vmatprep.mubr.bf16.mxu0 0
    %2019 = vmatmul.mubr.bf16.gmra.mrb[0].mxu0 %v1914
    %v2020 = vpop.f32.mrb[0].mxu0
    %v2021 = vadd.f32 %v1936, %v2020
    %v2022 = vpop.f32.mrb[0].mxu0
    %v2023 = vpop.f32.mrb[0].mxu0
    %v2024 = vpop.f32.mrb[0].mxu0
    %2025 = vdwg.mxu0
    %2026 = vmax.xlane.f32.xlu0 %v2021
    %v2027 = vpop.xlane.xlu0 %2026
    %v2028 = vsub.f32 %v2021, %v2027
    %v2029 = vmul.f32 %v2028, 1.442695
    %v2030 = vpow.pop %v2029
    %2031 = vadd.xlane.f32.xlu0 %v2030
    %v2032 = vpop.xlane.xlu0 %2031
    %v2033 = vlog2.pop %v2032
    %v2034 = vmul.f32 %v2033, 0.6931472
    %v2035 = vsub.f32 %v2028, %v2034
    %2036 = vst [vmem:[#allocation9] sm:$0xff] %v2035
    // Predicated region
    $region38: #{wiki_classifier_forward.1} parent=1 // pred_check
      _
    $region39: #{wiki_classifier_forward.1} parent=1 // pred_check_branch
      %2038 = sbr.rel (0) target = $region41
    $region40: #{wiki_classifier_forward.1} parent=1 // pred_region
      %s2040 = ssub.s32 128, 128
      %2041 = vsyncadd [#allocation6], %s2040
      %s2043 = sshll.u32 [#allocation9], 4
      %s2044 = int_to_ptr.vmem [resolvable:$true] %s2043
      %2046 = dma.vmem_to_hbm [thread:$0]  %s2044, 128, %s7, [#allocation6]
    $region41: #{wiki_classifier_forward.1} parent=1 // pred_fallthru
      _
    // Predicated region
    $region42: #{wiki_classifier_forward.1} parent=1 // pred_check
      _
    $region43: #{wiki_classifier_forward.1} parent=1 // pred_check_branch
      %2048 = sbr.rel (0) target = $region45
    $region44: #{wiki_classifier_forward.1} parent=1 // pred_region
      %2049 = dma.done [#allocation6], 128
    $region45: #{wiki_classifier_forward.1} parent=1 // pred_fallthru
      _
    %2050 = vsyncpa [#allocation5], 1
    %2051 = vsyncpa [#allocation8], 1
    %2052 = vsyncpa [#allocation6], 1

</llo_original>
